<compile_context>
chip_gen: v5e
topology: v5e:2x2
jax: 0.10.0
libtpu: 0.0.40
codegen_flags: <defaults>
</compile_context>

<pallas_src>
import functools

import jax
import jax.numpy as jnp
from jax.experimental import pallas as pl
from jax.experimental.pallas import tpu as pltpu


# ----------------------------------------------------------------------------
# Fused kernel: one grid step = one batch image.
# ----------------------------------------------------------------------------
def _edge_branch_kernel(x_ref, w1_ref, b1_ref, w2p_ref, w2l_ref, b2_ref,
                        w3_ref, b3_ref, wh_ref, wwt_ref,
                        egf_ref, up_ref,
                        xpad_ref, epad_ref,
                        *, H, W, c_mid):
    f32 = jnp.float32
    bf16 = jnp.bfloat16

    # --- re-zero only the 1-pixel halo; the interior is overwritten below ---
    # (scratch persists across grid steps / cores, so do it unconditionally —
    #  it is O(H + W) * c_mid work, not O(H*W) * c_mid.)
    zrow = jnp.zeros((1, W + 2, c_mid), f32)
    zcol = jnp.zeros((H + 2, 1, c_mid), f32)
    for pad_ref in (xpad_ref, epad_ref):
        pad_ref[0:1] = zrow
        pad_ref[H + 1:H + 2] = zrow
        pad_ref[:, 0:1] = zcol
        pad_ref[:, W + 1:W + 2] = zcol

    # ---- edge_conv1: 1x1 conv + folded BN + ReLU (pure channel matmul) ----
    c_in = x_ref.shape[-1]
    x = x_ref[0].reshape(H * W, c_in)                          # (HW, Cin) bf16
    h1 = jnp.dot(x, w1_ref[...], preferred_element_type=f32)   # MXU, f32 acc
    h1 = jnp.maximum(h1 + b1_ref[...], 0.0)                    # (HW, c_mid) f32
    xpad_ref[1:H + 1, 1:W + 1, :] = h1.reshape(H, W, c_mid)

    # ---- edge_conv2: 3x3 conv (pad 1) + folded BN + ReLU ----
    # im2col fused in VMEM; taps paired along K (K = 2*c_mid = 256) so the
    # 256-deep MXU on v6e/v7x is fully loaded (v5e splits it into 2 passes).
    def xtap(t):                                               # tap t = dy*3+dx
        dy, dx = divmod(t, 3)
        return xpad_ref[dy:dy + H, dx:dx + W, :].reshape(H * W, c_mid)

    acc2 = jnp.zeros((H * W, c_mid), f32)
    for p in range(4):
        t0 = 2 * p
        lhs = jnp.concatenate([xtap(t0), xtap(t0 + 1)], axis=-1)     # (HW, 2c)
        acc2 = acc2 + jnp.dot(lhs.astype(bf16), w2p_ref[p],
                              preferred_element_type=f32)
    acc2 = acc2 + jnp.dot(xtap(8).astype(bf16), w2l_ref[...],
                          preferred_element_type=f32)
    egf = jnp.maximum(acc2 + b2_ref[...], 0.0)                 # (HW, c_mid) f32
    egf_hw = egf.reshape(H, W, c_mid)
    egf_ref[0] = egf_hw.astype(bf16)                           # bf16, lane-dense
    epad_ref[1:H + 1, 1:W + 1, :] = egf_hw

    # ---- edge_conv3: 3x3 conv (pad 1) -> 1 channel + bias ----
    # Single output channel: per-tap multiply + lane reduce into a small
    # (H, W) accumulator; no 1-lane matmul, no big live accumulator.
    w3 = w3_ref[...]                                           # (9, c_mid) f32
    edge_pre = jnp.zeros((H, W), f32)
    for t in range(9):
        dy, dx = divmod(t, 3)
        sl = epad_ref[dy:dy + H, dx:dx + W, :]                 # (H, W, c_mid)
        edge_pre = edge_pre + jnp.sum(sl * w3[t:t + 1].reshape(1, 1, c_mid),
                                      axis=-1)
    edge_pre = edge_pre + b3_ref[0]                            # scalar from SMEM

    # ---- F.interpolate(x4, bilinear, align_corners=True): two bf16 matmuls ----
    up = jnp.dot(wh_ref[...], edge_pre.astype(bf16),
                 preferred_element_type=f32)                   # (4H, W) f32
    up = jnp.dot(up.astype(bf16), wwt_ref[...],
                 preferred_element_type=f32)                   # (4H, 4W) f32
    up_ref[0] = up


# ----------------------------------------------------------------------------
# Glue: BN folding, weight layout, interpolation matrices, pallas_call wrapper
# ----------------------------------------------------------------------------
def _interp_matrix(n_in, n_out):
    """Row-interpolation matrix matching F.interpolate(align_corners=True)."""
    if n_in == 1:
        return jnp.ones((n_out, 1), jnp.float32)
    src = jnp.arange(n_out, dtype=jnp.float32) * ((n_in - 1) / (n_out - 1))
    lo = jnp.clip(jnp.floor(src).astype(jnp.int32), 0, n_in - 1)
    hi = jnp.clip(lo + 1, 0, n_in - 1)
    frac = src - lo.astype(jnp.float32)
    return (jax.nn.one_hot(lo, n_in, dtype=jnp.float32) * (1.0 - frac)[:, None]
            + jax.nn.one_hot(hi, n_in, dtype=jnp.float32) * frac[:, None])


def _fold_bn(conv_bias, bn, eps=1e-5):
    scale = bn["gamma"] / jnp.sqrt(bn["var"] + eps)
    bias = bn["beta"] + scale * (conv_bias - bn["mean"])
    return scale, bias


def isnet_edge_forward(x1_nchw, params):
    """ISNet edge branch. x1: backbone layer1 feature map, NCHW, 256 channels."""
    B, C, H, W = x1_nchw.shape
    c_mid = params["w1"].shape[0]
    assert W % 8 == 0, "kernel assumes W is a multiple of the 8-sublane tile"

    # Fold eval-mode BN scale into the conv weights; keep only a bias epilogue.
    s1, bias1 = _fold_bn(params["b1"], params["bn1"])
    s2, bias2 = _fold_bn(params["b2"], params["bn2"])

    w1 = (params["w1"].reshape(c_mid, C) * s1[:, None]).T.astype(jnp.bfloat16)
    w2_taps = (jnp.transpose(params["w2"] * s2[:, None, None, None], (2, 3, 1, 0))
               .reshape(9, c_mid, c_mid)).astype(jnp.bfloat16)   # (tap, cin, cout)
    w2p = w2_taps[:8].reshape(4, 2 * c_mid, c_mid)               # paired taps, K=2c
    w2l = w2_taps[8]                                             # last tap,   K=c
    w3 = (jnp.transpose(params["w3"], (2, 3, 1, 0))
          .reshape(9, c_mid)).astype(jnp.float32)                # (tap, cin)
    b1 = bias1[None, :].astype(jnp.float32)
    b2 = bias2[None, :].astype(jnp.float32)
    b3 = params["b3"].reshape(1).astype(jnp.float32)             # scalar -> SMEM

    wh = _interp_matrix(H, 4 * H).astype(jnp.bfloat16)           # (4H, H)
    wwt = _interp_matrix(W, 4 * W).T.astype(jnp.bfloat16)        # (W, 4W)

    # TODO(synk): a real pipeline would feed NHWC activations straight from the
    # backbone; here we convert once from the PyTorch NCHW layout.
    x1_nhwc = jnp.transpose(x1_nchw, (0, 2, 3, 1)).astype(jnp.bfloat16)

    kernel = functools.partial(_edge_branch_kernel, H=H, W=W, c_mid=c_mid)

    egf_nhwc, edge_up = pl.pallas_call(
        kernel,
        out_shape=(
            jax.ShapeDtypeStruct((B, H, W, c_mid), jnp.bfloat16),
            jax.ShapeDtypeStruct((B, 4 * H, 4 * W), jnp.float32),
        ),
        grid_spec=pltpu.PrefetchScalarGridSpec(
            num_scalar_prefetch=0,
            grid=(B,),
            in_specs=[
                pl.BlockSpec((1, H, W, C), lambda b: (b, 0, 0, 0)),         # x1 (NHWC)
                pl.BlockSpec((C, c_mid), lambda b: (0, 0)),                 # w1
                pl.BlockSpec((1, c_mid), lambda b: (0, 0)),                 # b1
                pl.BlockSpec((4, 2 * c_mid, c_mid), lambda b: (0, 0, 0)),   # w2 pairs
                pl.BlockSpec((c_mid, c_mid), lambda b: (0, 0)),             # w2 last tap
                pl.BlockSpec((1, c_mid), lambda b: (0, 0)),                 # b2
                pl.BlockSpec((9, c_mid), lambda b: (0, 0)),                 # w3
                pl.BlockSpec(memory_space=pltpu.SMEM),                      # b3 scalar
                pl.BlockSpec((4 * H, H), lambda b: (0, 0)),                 # wh
                pl.BlockSpec((W, 4 * W), lambda b: (0, 0)),                 # wwt
            ],
            out_specs=[
                pl.BlockSpec((1, H, W, c_mid), lambda b: (b, 0, 0, 0)),
                pl.BlockSpec((1, 4 * H, 4 * W), lambda b: (b, 0, 0)),
            ],
            scratch_shapes=[
                pltpu.VMEM((H + 2, W + 2, c_mid), jnp.float32),   # padded x_edge
                pltpu.VMEM((H + 2, W + 2, c_mid), jnp.float32),   # padded edge_guidance
            ],
        ),
        compiler_params=pltpu.CompilerParams(
            dimension_semantics=("parallel",),
            vmem_limit_bytes=64 * 1024 * 1024),
    )(x1_nhwc, w1, b1, w2p, w2l, b2, w3, b3, wh, wwt)

    edge_pre_up = edge_up[:, None, :, :]                          # (B,1,4H,4W)
    # TODO(synk): the FCN head consuming edge_guidance_feat is not provided; a
    # real pipeline would keep it in NHWC/bf16.  Transpose kept only to return
    # the PyTorch (NCHW) layout.
    edge_guidance_feat = jnp.transpose(egf_nhwc, (0, 3, 1, 2))
    return edge_pre_up, edge_guidance_feat


# ----------------------------------------------------------------------------
# Parameter init (PyTorch layouts, f32) and a pure-JAX reference
# ----------------------------------------------------------------------------
def init_isnet_edge_params(key, c_in=256):
    c_mid = c_in // 2
    ks = jax.random.split(key, 8)

    def conv_w(k, shape, fan_in):
        return jax.random.normal(k, shape, jnp.float32) / jnp.sqrt(float(fan_in))

    def bn(k):
        k1, k2, k3, k4 = jax.random.split(k, 4)
        return dict(
            gamma=1.0 + 0.1 * jax.random.normal(k1, (c_mid,), jnp.float32),
            beta=0.1 * jax.random.normal(k2, (c_mid,), jnp.float32),
            mean=0.1 * jax.random.normal(k3, (c_mid,), jnp.float32),
            var=1.0 + 0.1 * jnp.abs(jax.random.normal(k4, (c_mid,), jnp.float32)),
        )

    return {
        # edge_conv1 = My_BasicConv2d(256, 128, k=1): Conv2d(bias) + BN + ReLU
        "w1": conv_w(ks[0], (c_mid, c_in, 1, 1), c_in),
        "b1": 0.01 * jax.random.normal(ks[1], (c_mid,), jnp.float32),
        "bn1": bn(ks[2]),
        # edge_conv2 = My_BasicConv2d(128, 128, k=3, pad=1)
        "w2": conv_w(ks[3], (c_mid, c_mid, 3, 3), 9 * c_mid),
        "b2": 0.01 * jax.random.normal(ks[4], (c_mid,), jnp.float32),
        "bn2": bn(ks[5]),
        # edge_conv3 = nn.Conv2d(128, 1, k=3, pad=1)
        "w3": conv_w(ks[6], (1, c_mid, 3, 3), 9 * c_mid),
        "b3": 0.01 * jax.random.normal(ks[7], (1,), jnp.float32),
    }


def _reference_forward(x1_nchw, params, eps=1e-5):
    """Pure-JAX f32 reference of the same branch (for correctness check)."""
    def conv(x, w, b, pad):
        y = jax.lax.conv_general_dilated(
            x, w, window_strides=(1, 1), padding=[(pad, pad), (pad, pad)],
            dimension_numbers=("NCHW", "OIHW", "NCHW"))
        return y + b[None, :, None, None]

    def bnorm(x, bn):
        s = bn["gamma"] / jnp.sqrt(bn["var"] + eps)
        return x * s[None, :, None, None] + (bn["beta"] - bn["mean"] * s)[None, :, None, None]

    x = jax.nn.relu(bnorm(conv(x1_nchw, params["w1"], params["b1"], 0), params["bn1"]))
    egf = jax.nn.relu(bnorm(conv(x, params["w2"], params["b2"], 1), params["bn2"]))
    ep = conv(egf, params["w3"], params["b3"], 1)
    _, _, H, W = ep.shape
    wh = _interp_matrix(H, 4 * H)
    wwt = _interp_matrix(W, 4 * W).T
    ep_up = jnp.einsum("ih,bchw,wj->bcij", wh, ep, wwt)
    return ep_up, egf


if __name__ == "__main__":
    key = jax.random.PRNGKey(0)
    kx, kp = jax.random.split(key)

    B, C, H, W = 2, 256, 8, 8          # x1 = ResNet layer1 output (fpn_sizes[0]=256)
    x1 = jax.random.normal(kx, (B, C, H, W), jnp.float32)
    params = init_isnet_edge_params(kp, c_in=C)

    edge_pre, edge_feat = jax.jit(isnet_edge_forward)(x1, params)
    jax.block_until_ready((edge_pre, edge_feat))

    assert edge_pre.shape == (B, 1, 4 * H, 4 * W)
    assert edge_feat.shape == (B, C // 2, H, W)
    assert bool(jnp.all(jnp.isfinite(edge_pre))) and bool(jnp.all(jnp.isfinite(edge_feat)))

    ref_pre, ref_feat = jax.jit(_reference_forward)(x1, params)
    jax.block_until_ready((ref_pre, ref_feat))
    err_pre = float(jnp.max(jnp.abs(edge_pre - ref_pre)))
    err_feat = float(jnp.max(jnp.abs(edge_feat.astype(jnp.float32) - ref_feat)))
    # bf16 activations/weights end-to-end (convs + upsample + bf16 egf output)
    # with f32 accumulation: loose tolerance against the f32 reference.
    assert err_pre < 0.2 and err_feat < 0.2, (err_pre, err_feat)

    print("KERNEL_OK")
</pallas_src>

<mosaic_0001>
module attributes {stable_mosaic.version = 11 : i64} {
  func.func @_edge_branch_kernel(%arg0: i32, %arg1: memref<1x8x8x256xbf16, #tpu.memory_space<vmem>>, %arg2: memref<256x128xbf16, #tpu.memory_space<vmem>>, %arg3: memref<1x128xf32, #tpu.memory_space<vmem>>, %arg4: memref<4x256x128xbf16, #tpu.memory_space<vmem>>, %arg5: memref<128x128xbf16, #tpu.memory_space<vmem>>, %arg6: memref<1x128xf32, #tpu.memory_space<vmem>>, %arg7: memref<9x128xf32, #tpu.memory_space<vmem>>, %arg8: memref<1xf32, #tpu.memory_space<smem>>, %arg9: memref<32x8xbf16, #tpu.memory_space<vmem>>, %arg10: memref<8x32xbf16, #tpu.memory_space<vmem>>, %arg11: memref<1x8x8x128xbf16, #tpu.memory_space<vmem>>, %arg12: memref<1x32x32xf32, #tpu.memory_space<vmem>>, %arg13: memref<10x10x128xf32, #tpu.memory_space<vmem>>, %arg14: memref<10x10x128xf32, #tpu.memory_space<vmem>>) attributes {dimension_semantics = [#tpu.dimension_semantics<parallel>], iteration_bounds = array<i64: 2>, scalar_prefetch = 0 : i64, scratch_operands = 2 : i64, tpu.core_type = #tpu.core_type<tc>, window_params = [{transform_indices = @transform_0, window_bounds = array<i64: 1, 8, 8, 256>}, {pipeline_mode = #tpu.pipeline_mode<synchronous>, transform_indices = @transform_1, window_bounds = array<i64: 256, 128>}, {pipeline_mode = #tpu.pipeline_mode<synchronous>, transform_indices = @transform_2, window_bounds = array<i64: 1, 128>}, {pipeline_mode = #tpu.pipeline_mode<synchronous>, transform_indices = @transform_3, window_bounds = array<i64: 4, 256, 128>}, {pipeline_mode = #tpu.pipeline_mode<synchronous>, transform_indices = @transform_4, window_bounds = array<i64: 128, 128>}, {pipeline_mode = #tpu.pipeline_mode<synchronous>, transform_indices = @transform_5, window_bounds = array<i64: 1, 128>}, {pipeline_mode = #tpu.pipeline_mode<synchronous>, transform_indices = @transform_6, window_bounds = array<i64: 9, 128>}, {transform_indices = @transform_7, window_bounds = array<i64: 1>}, {pipeline_mode = #tpu.pipeline_mode<synchronous>, transform_indices = @transform_8, window_bounds = array<i64: 32, 8>}, {pipeline_mode = #tpu.pipeline_mode<synchronous>, transform_indices = @transform_9, window_bounds = array<i64: 8, 32>}, {transform_indices = @transform_10, window_bounds = array<i64: 1, 8, 8, 128>}, {transform_indices = @transform_11, window_bounds = array<i64: 1, 32, 32>}]} {
    %cst = arith.constant 0.000000e+00 : f32
    %0 = vector.broadcast %cst : f32 to vector<1x10x128xf32>
    %cst_0 = arith.constant 0.000000e+00 : f32
    %1 = vector.broadcast %cst_0 : f32 to vector<10x1x128xf32>
    %c0 = arith.constant 0 : index
    %c0_1 = arith.constant 0 : index
    %c0_2 = arith.constant 0 : index
    %2 = vector.load %arg13[%c0, %c0_1, %c0_2] : memref<10x10x128xf32, #tpu.memory_space<vmem>>, vector<1x10x128xf32>
    tpu.vector_store %arg13[%c0, %c0_1, %c0_2], %0 {strides = array<i32>} : memref<10x10x128xf32, #tpu.memory_space<vmem>>, vector<1x10x128xf32>,
    %c9 = arith.constant 9 : index
    %c0_3 = arith.constant 0 : index
    %c0_4 = arith.constant 0 : index
    %3 = vector.load %arg13[%c9, %c0_3, %c0_4] : memref<10x10x128xf32, #tpu.memory_space<vmem>>, vector<1x10x128xf32>
    tpu.vector_store %arg13[%c9, %c0_3, %c0_4], %0 {strides = array<i32>} : memref<10x10x128xf32, #tpu.memory_space<vmem>>, vector<1x10x128xf32>,
    %c0_5 = arith.constant 0 : index
    %c0_6 = arith.constant 0 : index
    %c0_7 = arith.constant 0 : index
    %4 = vector.load %arg13[%c0_5, %c0_6, %c0_7] : memref<10x10x128xf32, #tpu.memory_space<vmem>>, vector<10x1x128xf32>
    tpu.vector_store %arg13[%c0_5, %c0_6, %c0_7], %1 {strides = array<i32>} : memref<10x10x128xf32, #tpu.memory_space<vmem>>, vector<10x1x128xf32>,
    %c0_8 = arith.constant 0 : index
    %c9_9 = arith.constant 9 : index
    %c0_10 = arith.constant 0 : index
    %5 = vector.load %arg13[%c0_8, %c9_9, %c0_10] : memref<10x10x128xf32, #tpu.memory_space<vmem>>, vector<10x1x128xf32>
    tpu.vector_store %arg13[%c0_8, %c9_9, %c0_10], %1 {strides = array<i32>} : memref<10x10x128xf32, #tpu.memory_space<vmem>>, vector<10x1x128xf32>,
    %c0_11 = arith.constant 0 : index
    %c0_12 = arith.constant 0 : index
    %c0_13 = arith.constant 0 : index
    %6 = vector.load %arg14[%c0_11, %c0_12, %c0_13] : memref<10x10x128xf32, #tpu.memory_space<vmem>>, vector<1x10x128xf32>
    tpu.vector_store %arg14[%c0_11, %c0_12, %c0_13], %0 {strides = array<i32>} : memref<10x10x128xf32, #tpu.memory_space<vmem>>, vector<1x10x128xf32>,
    %c9_14 = arith.constant 9 : index
    %c0_15 = arith.constant 0 : index
    %c0_16 = arith.constant 0 : index
    %7 = vector.load %arg14[%c9_14, %c0_15, %c0_16] : memref<10x10x128xf32, #tpu.memory_space<vmem>>, vector<1x10x128xf32>
    tpu.vector_store %arg14[%c9_14, %c0_15, %c0_16], %0 {strides = array<i32>} : memref<10x10x128xf32, #tpu.memory_space<vmem>>, vector<1x10x128xf32>,
    %c0_17 = arith.constant 0 : index
    %c0_18 = arith.constant 0 : index
    %c0_19 = arith.constant 0 : index
    %8 = vector.load %arg14[%c0_17, %c0_18, %c0_19] : memref<10x10x128xf32, #tpu.memory_space<vmem>>, vector<10x1x128xf32>
    tpu.vector_store %arg14[%c0_17, %c0_18, %c0_19], %1 {strides = array<i32>} : memref<10x10x128xf32, #tpu.memory_space<vmem>>, vector<10x1x128xf32>,
    %c0_20 = arith.constant 0 : index
    %c9_21 = arith.constant 9 : index
    %c0_22 = arith.constant 0 : index
    %9 = vector.load %arg14[%c0_20, %c9_21, %c0_22] : memref<10x10x128xf32, #tpu.memory_space<vmem>>, vector<10x1x128xf32>
    tpu.vector_store %arg14[%c0_20, %c9_21, %c0_22], %1 {strides = array<i32>} : memref<10x10x128xf32, #tpu.memory_space<vmem>>, vector<10x1x128xf32>,
    %c0_23 = arith.constant 0 : index
    %c0_24 = arith.constant 0 : index
    %c0_25 = arith.constant 0 : index
    %c0_26 = arith.constant 0 : index
    %10 = vector.load %arg1[%c0_23, %c0_24, %c0_25, %c0_26] : memref<1x8x8x256xbf16, #tpu.memory_space<vmem>>, vector<1x8x8x256xbf16>
    %11 = vector.shape_cast %10 : vector<1x8x8x256xbf16> to vector<8x8x256xbf16>
    %12 = vector.shape_cast %11 : vector<8x8x256xbf16> to vector<64x256xbf16>
    %c0_27 = arith.constant 0 : index
    %c0_28 = arith.constant 0 : index
    %13 = vector.load %arg2[%c0_27, %c0_28] : memref<256x128xbf16, #tpu.memory_space<vmem>>, vector<256x128xbf16>
    %cst_29 = arith.constant dense<0.000000e+00> : vector<64x128xf32>
    %14 = tpu.matmul %12, %13, %cst_29 {dimension_numbers = #tpu.dot_dimension_numbers<[1], [0], [0], [1], [0, 0, 1, 1], [], []>} : vector<64x256xbf16>, vector<256x128xbf16>, vector<64x128xf32> -> vector<64x128xf32>
    %c0_30 = arith.constant 0 : index
    %c0_31 = arith.constant 0 : index
    %15 = vector.load %arg3[%c0_30, %c0_31] : memref<1x128xf32, #tpu.memory_space<vmem>>, vector<1x128xf32>
    %16 = vector.broadcast %15 : vector<1x128xf32> to vector<64x128xf32>
    %17 = arith.addf %14, %16 : vector<64x128xf32>
    %cst_32 = arith.constant 0.000000e+00 : f32
    %18 = vector.broadcast %cst_32 : f32 to vector<64x128xf32>
    %19 = arith.maximumf %17, %18 : vector<64x128xf32>
    %20 = vector.shape_cast %19 : vector<64x128xf32> to vector<8x8x128xf32>
    %c1 = arith.constant 1 : index
    %c1_33 = arith.constant 1 : index
    %c0_34 = arith.constant 0 : index
    %21 = vector.load %arg13[%c1, %c1_33, %c0_34] : memref<10x10x128xf32, #tpu.memory_space<vmem>>, vector<8x8x128xf32>
    tpu.vector_store %arg13[%c1, %c1_33, %c0_34], %20 {strides = array<i32>} : memref<10x10x128xf32, #tpu.memory_space<vmem>>, vector<8x8x128xf32>,
    %cst_35 = arith.constant 0.000000e+00 : f32
    %22 = vector.broadcast %cst_35 : f32 to vector<64x128xf32>
    %c0_36 = arith.constant 0 : index
    %c0_37 = arith.constant 0 : index
    %c0_38 = arith.constant 0 : index
    %23 = vector.load %arg13[%c0_36, %c0_37, %c0_38] : memref<10x10x128xf32, #tpu.memory_space<vmem>>, vector<8x8x128xf32>
    %24 = vector.shape_cast %23 : vector<8x8x128xf32> to vector<64x128xf32>
    %c0_39 = arith.constant 0 : index
    %c1_40 = arith.constant 1 : index
    %c0_41 = arith.constant 0 : index
    %25 = vector.load %arg13[%c0_39, %c1_40, %c0_41] : memref<10x10x128xf32, #tpu.memory_space<vmem>>, vector<8x8x128xf32>
    %26 = vector.shape_cast %25 : vector<8x8x128xf32> to vector<64x128xf32>
    %27 = tpu.concatenate %24, %26 in 1 : vector<64x128xf32>, vector<64x128xf32> -> vector<64x256xf32>
    %28 = arith.truncf %27 : vector<64x256xf32> to vector<64x256xbf16>
    %c0_42 = arith.constant 0 : index
    %c0_43 = arith.constant 0 : index
    %c0_44 = arith.constant 0 : index
    %29 = vector.load %arg4[%c0_42, %c0_43, %c0_44] : memref<4x256x128xbf16, #tpu.memory_space<vmem>>, vector<1x256x128xbf16>
    %30 = vector.shape_cast %29 : vector<1x256x128xbf16> to vector<256x128xbf16>
    %cst_45 = arith.constant dense<0.000000e+00> : vector<64x128xf32>
    %31 = tpu.matmul %28, %30, %cst_45 {dimension_numbers = #tpu.dot_dimension_numbers<[1], [0], [0], [1], [0, 0, 1, 1], [], []>} : vector<64x256xbf16>, vector<256x128xbf16>, vector<64x128xf32> -> vector<64x128xf32>
    %32 = arith.addf %22, %31 : vector<64x128xf32>
    %c0_46 = arith.constant 0 : index
    %c2 = arith.constant 2 : index
    %c0_47 = arith.constant 0 : index
    %33 = vector.load %arg13[%c0_46, %c2, %c0_47] : memref<10x10x128xf32, #tpu.memory_space<vmem>>, vector<8x8x128xf32>
    %34 = vector.shape_cast %33 : vector<8x8x128xf32> to vector<64x128xf32>
    %c1_48 = arith.constant 1 : index
    %c0_49 = arith.constant 0 : index
    %c0_50 = arith.constant 0 : index
    %35 = vector.load %arg13[%c1_48, %c0_49, %c0_50] : memref<10x10x128xf32, #tpu.memory_space<vmem>>, vector<8x8x128xf32>
    %36 = vector.shape_cast %35 : vector<8x8x128xf32> to vector<64x128xf32>
    %37 = tpu.concatenate %34, %36 in 1 : vector<64x128xf32>, vector<64x128xf32> -> vector<64x256xf32>
    %38 = arith.truncf %37 : vector<64x256xf32> to vector<64x256xbf16>
    %c1_51 = arith.constant 1 : index
    %c0_52 = arith.constant 0 : index
    %c0_53 = arith.constant 0 : index
    %39 = vector.load %arg4[%c1_51, %c0_52, %c0_53] : memref<4x256x128xbf16, #tpu.memory_space<vmem>>, vector<1x256x128xbf16>
    %40 = vector.shape_cast %39 : vector<1x256x128xbf16> to vector<256x128xbf16>
    %cst_54 = arith.constant dense<0.000000e+00> : vector<64x128xf32>
    %41 = tpu.matmul %38, %40, %cst_54 {dimension_numbers = #tpu.dot_dimension_numbers<[1], [0], [0], [1], [0, 0, 1, 1], [], []>} : vector<64x256xbf16>, vector<256x128xbf16>, vector<64x128xf32> -> vector<64x128xf32>
    %42 = arith.addf %32, %41 : vector<64x128xf32>
    %c1_55 = arith.constant 1 : index
    %c1_56 = arith.constant 1 : index
    %c0_57 = arith.constant 0 : index
    %43 = vector.load %arg13[%c1_55, %c1_56, %c0_57] : memref<10x10x128xf32, #tpu.memory_space<vmem>>, vector<8x8x128xf32>
    %44 = vector.shape_cast %43 : vector<8x8x128xf32> to vector<64x128xf32>
    %c1_58 = arith.constant 1 : index
    %c2_59 = arith.constant 2 : index
    %c0_60 = arith.constant 0 : index
    %45 = vector.load %arg13[%c1_58, %c2_59, %c0_60] : memref<10x10x128xf32, #tpu.memory_space<vmem>>, vector<8x8x128xf32>
    %46 = vector.shape_cast %45 : vector<8x8x128xf32> to vector<64x128xf32>
    %47 = tpu.concatenate %44, %46 in 1 : vector<64x128xf32>, vector<64x128xf32> -> vector<64x256xf32>
    %48 = arith.truncf %47 : vector<64x256xf32> to vector<64x256xbf16>
    %c2_61 = arith.constant 2 : index
    %c0_62 = arith.constant 0 : index
    %c0_63 = arith.constant 0 : index
    %49 = vector.load %arg4[%c2_61, %c0_62, %c0_63] : memref<4x256x128xbf16, #tpu.memory_space<vmem>>, vector<1x256x128xbf16>
    %50 = vector.shape_cast %49 : vector<1x256x128xbf16> to vector<256x128xbf16>
    %cst_64 = arith.constant dense<0.000000e+00> : vector<64x128xf32>
    %51 = tpu.matmul %48, %50, %cst_64 {dimension_numbers = #tpu.dot_dimension_numbers<[1], [0], [0], [1], [0, 0, 1, 1], [], []>} : vector<64x256xbf16>, vector<256x128xbf16>, vector<64x128xf32> -> vector<64x128xf32>
    %52 = arith.addf %42, %51 : vector<64x128xf32>
    %c2_65 = arith.constant 2 : index
    %c0_66 = arith.constant 0 : index
    %c0_67 = arith.constant 0 : index
    %53 = vector.load %arg13[%c2_65, %c0_66, %c0_67] : memref<10x10x128xf32, #tpu.memory_space<vmem>>, vector<8x8x128xf32>
    %54 = vector.shape_cast %53 : vector<8x8x128xf32> to vector<64x128xf32>
    %c2_68 = arith.constant 2 : index
    %c1_69 = arith.constant 1 : index
    %c0_70 = arith.constant 0 : index
    %55 = vector.load %arg13[%c2_68, %c1_69, %c0_70] : memref<10x10x128xf32, #tpu.memory_space<vmem>>, vector<8x8x128xf32>
    %56 = vector.shape_cast %55 : vector<8x8x128xf32> to vector<64x128xf32>
    %57 = tpu.concatenate %54, %56 in 1 : vector<64x128xf32>, vector<64x128xf32> -> vector<64x256xf32>
    %58 = arith.truncf %57 : vector<64x256xf32> to vector<64x256xbf16>
    %c3 = arith.constant 3 : index
    %c0_71 = arith.constant 0 : index
    %c0_72 = arith.constant 0 : index
    %59 = vector.load %arg4[%c3, %c0_71, %c0_72] : memref<4x256x128xbf16, #tpu.memory_space<vmem>>, vector<1x256x128xbf16>
    %60 = vector.shape_cast %59 : vector<1x256x128xbf16> to vector<256x128xbf16>
    %cst_73 = arith.constant dense<0.000000e+00> : vector<64x128xf32>
    %61 = tpu.matmul %58, %60, %cst_73 {dimension_numbers = #tpu.dot_dimension_numbers<[1], [0], [0], [1], [0, 0, 1, 1], [], []>} : vector<64x256xbf16>, vector<256x128xbf16>, vector<64x128xf32> -> vector<64x128xf32>
    %62 = arith.addf %52, %61 : vector<64x128xf32>
    %c2_74 = arith.constant 2 : index
    %c2_75 = arith.constant 2 : index
    %c0_76 = arith.constant 0 : index
    %63 = vector.load %arg13[%c2_74, %c2_75, %c0_76] : memref<10x10x128xf32, #tpu.memory_space<vmem>>, vector<8x8x128xf32>
    %64 = vector.shape_cast %63 : vector<8x8x128xf32> to vector<64x128xf32>
    %65 = arith.truncf %64 : vector<64x128xf32> to vector<64x128xbf16>
    %c0_77 = arith.constant 0 : index
    %c0_78 = arith.constant 0 : index
    %66 = vector.load %arg5[%c0_77, %c0_78] : memref<128x128xbf16, #tpu.memory_space<vmem>>, vector<128x128xbf16>
    %cst_79 = arith.constant dense<0.000000e+00> : vector<64x128xf32>
    %67 = tpu.matmul %65, %66, %cst_79 {dimension_numbers = #tpu.dot_dimension_numbers<[1], [0], [0], [1], [0, 0, 1, 1], [], []>} : vector<64x128xbf16>, vector<128x128xbf16>, vector<64x128xf32> -> vector<64x128xf32>
    %68 = arith.addf %62, %67 : vector<64x128xf32>
    %c0_80 = arith.constant 0 : index
    %c0_81 = arith.constant 0 : index
    %69 = vector.load %arg6[%c0_80, %c0_81] : memref<1x128xf32, #tpu.memory_space<vmem>>, vector<1x128xf32>
    %70 = vector.broadcast %69 : vector<1x128xf32> to vector<64x128xf32>
    %71 = arith.addf %68, %70 : vector<64x128xf32>
    %cst_82 = arith.constant 0.000000e+00 : f32
    %72 = vector.broadcast %cst_82 : f32 to vector<64x128xf32>
    %73 = arith.maximumf %71, %72 : vector<64x128xf32>
    %74 = vector.shape_cast %73 : vector<64x128xf32> to vector<8x8x128xf32>
    %75 = arith.truncf %74 : vector<8x8x128xf32> to vector<8x8x128xbf16>
    %c0_83 = arith.constant 0 : index
    %c0_84 = arith.constant 0 : index
    %c0_85 = arith.constant 0 : index
    %c0_86 = arith.constant 0 : index
    %76 = vector.load %arg11[%c0_83, %c0_84, %c0_85, %c0_86] : memref<1x8x8x128xbf16, #tpu.memory_space<vmem>>, vector<1x8x8x128xbf16>
    %77 = vector.shape_cast %76 : vector<1x8x8x128xbf16> to vector<8x8x128xbf16>
    %78 = vector.shape_cast %75 : vector<8x8x128xbf16> to vector<1x8x8x128xbf16>
    tpu.vector_store %arg11[%c0_83, %c0_84, %c0_85, %c0_86], %78 {strides = array<i32>} : memref<1x8x8x128xbf16, #tpu.memory_space<vmem>>, vector<1x8x8x128xbf16>,
    %c1_87 = arith.constant 1 : index
    %c1_88 = arith.constant 1 : index
    %c0_89 = arith.constant 0 : index
    %79 = vector.load %arg14[%c1_87, %c1_88, %c0_89] : memref<10x10x128xf32, #tpu.memory_space<vmem>>, vector<8x8x128xf32>
    tpu.vector_store %arg14[%c1_87, %c1_88, %c0_89], %74 {strides = array<i32>} : memref<10x10x128xf32, #tpu.memory_space<vmem>>, vector<8x8x128xf32>,
    %c0_90 = arith.constant 0 : index
    %c0_91 = arith.constant 0 : index
    %80 = vector.load %arg7[%c0_90, %c0_91] : memref<9x128xf32, #tpu.memory_space<vmem>>, vector<9x128xf32>
    %cst_92 = arith.constant 0.000000e+00 : f32
    %81 = vector.broadcast %cst_92 : f32 to vector<8x8xf32>
    %c0_93 = arith.constant 0 : index
    %c0_94 = arith.constant 0 : index
    %c0_95 = arith.constant 0 : index
    %82 = vector.load %arg14[%c0_93, %c0_94, %c0_95] : memref<10x10x128xf32, #tpu.memory_space<vmem>>, vector<8x8x128xf32>
    %83 = vector.extract_strided_slice %80 {offsets = [0, 0], sizes = [1, 128], strides = [1, 1]} : vector<9x128xf32> to vector<1x128xf32>
    %84 = vector.shape_cast %83 : vector<1x128xf32> to vector<1x1x128xf32>
    %85 = vector.broadcast %84 : vector<1x1x128xf32> to vector<8x8x128xf32>
    %86 = arith.mulf %82, %85 : vector<8x8x128xf32>
    %cst_96 = arith.constant dense<0.000000e+00> : vector<8x8xf32>
    %87 = vector.multi_reduction <add>, %86, %cst_96 [2] : vector<8x8x128xf32> to vector<8x8xf32>
    %88 = arith.addf %81, %87 : vector<8x8xf32>
    %c0_97 = arith.constant 0 : index
    %c1_98 = arith.constant 1 : index
    %c0_99 = arith.constant 0 : index
    %89 = vector.load %arg14[%c0_97, %c1_98, %c0_99] : memref<10x10x128xf32, #tpu.memory_space<vmem>>, vector<8x8x128xf32>
    %90 = vector.extract_strided_slice %80 {offsets = [1, 0], sizes = [1, 128], strides = [1, 1]} : vector<9x128xf32> to vector<1x128xf32>
    %91 = vector.shape_cast %90 : vector<1x128xf32> to vector<1x1x128xf32>
    %92 = vector.broadcast %91 : vector<1x1x128xf32> to vector<8x8x128xf32>
    %93 = arith.mulf %89, %92 : vector<8x8x128xf32>
    %cst_100 = arith.constant dense<0.000000e+00> : vector<8x8xf32>
    %94 = vector.multi_reduction <add>, %93, %cst_100 [2] : vector<8x8x128xf32> to vector<8x8xf32>
    %95 = arith.addf %88, %94 : vector<8x8xf32>
    %c0_101 = arith.constant 0 : index
    %c2_102 = arith.constant 2 : index
    %c0_103 = arith.constant 0 : index
    %96 = vector.load %arg14[%c0_101, %c2_102, %c0_103] : memref<10x10x128xf32, #tpu.memory_space<vmem>>, vector<8x8x128xf32>
    %97 = vector.extract_strided_slice %80 {offsets = [2, 0], sizes = [1, 128], strides = [1, 1]} : vector<9x128xf32> to vector<1x128xf32>
    %98 = vector.shape_cast %97 : vector<1x128xf32> to vector<1x1x128xf32>
    %99 = vector.broadcast %98 : vector<1x1x128xf32> to vector<8x8x128xf32>
    %100 = arith.mulf %96, %99 : vector<8x8x128xf32>
    %cst_104 = arith.constant dense<0.000000e+00> : vector<8x8xf32>
    %101 = vector.multi_reduction <add>, %100, %cst_104 [2] : vector<8x8x128xf32> to vector<8x8xf32>
    %102 = arith.addf %95, %101 : vector<8x8xf32>
    %c1_105 = arith.constant 1 : index
    %c0_106 = arith.constant 0 : index
    %c0_107 = arith.constant 0 : index
    %103 = vector.load %arg14[%c1_105, %c0_106, %c0_107] : memref<10x10x128xf32, #tpu.memory_space<vmem>>, vector<8x8x128xf32>
    %104 = vector.extract_strided_slice %80 {offsets = [3, 0], sizes = [1, 128], strides = [1, 1]} : vector<9x128xf32> to vector<1x128xf32>
    %105 = vector.shape_cast %104 : vector<1x128xf32> to vector<1x1x128xf32>
    %106 = vector.broadcast %105 : vector<1x1x128xf32> to vector<8x8x128xf32>
    %107 = arith.mulf %103, %106 : vector<8x8x128xf32>
    %cst_108 = arith.constant dense<0.000000e+00> : vector<8x8xf32>
    %108 = vector.multi_reduction <add>, %107, %cst_108 [2] : vector<8x8x128xf32> to vector<8x8xf32>
    %109 = arith.addf %102, %108 : vector<8x8xf32>
    %c1_109 = arith.constant 1 : index
    %c1_110 = arith.constant 1 : index
    %c0_111 = arith.constant 0 : index
    %110 = vector.load %arg14[%c1_109, %c1_110, %c0_111] : memref<10x10x128xf32, #tpu.memory_space<vmem>>, vector<8x8x128xf32>
    %111 = vector.extract_strided_slice %80 {offsets = [4, 0], sizes = [1, 128], strides = [1, 1]} : vector<9x128xf32> to vector<1x128xf32>
    %112 = vector.shape_cast %111 : vector<1x128xf32> to vector<1x1x128xf32>
    %113 = vector.broadcast %112 : vector<1x1x128xf32> to vector<8x8x128xf32>
    %114 = arith.mulf %110, %113 : vector<8x8x128xf32>
    %cst_112 = arith.constant dense<0.000000e+00> : vector<8x8xf32>
    %115 = vector.multi_reduction <add>, %114, %cst_112 [2] : vector<8x8x128xf32> to vector<8x8xf32>
    %116 = arith.addf %109, %115 : vector<8x8xf32>
    %c1_113 = arith.constant 1 : index
    %c2_114 = arith.constant 2 : index
    %c0_115 = arith.constant 0 : index
    %117 = vector.load %arg14[%c1_113, %c2_114, %c0_115] : memref<10x10x128xf32, #tpu.memory_space<vmem>>, vector<8x8x128xf32>
    %118 = vector.extract_strided_slice %80 {offsets = [5, 0], sizes = [1, 128], strides = [1, 1]} : vector<9x128xf32> to vector<1x128xf32>
    %119 = vector.shape_cast %118 : vector<1x128xf32> to vector<1x1x128xf32>
    %120 = vector.broadcast %119 : vector<1x1x128xf32> to vector<8x8x128xf32>
    %121 = arith.mulf %117, %120 : vector<8x8x128xf32>
    %cst_116 = arith.constant dense<0.000000e+00> : vector<8x8xf32>
    %122 = vector.multi_reduction <add>, %121, %cst_116 [2] : vector<8x8x128xf32> to vector<8x8xf32>
    %123 = arith.addf %116, %122 : vector<8x8xf32>
    %c2_117 = arith.constant 2 : index
    %c0_118 = arith.constant 0 : index
    %c0_119 = arith.constant 0 : index
    %124 = vector.load %arg14[%c2_117, %c0_118, %c0_119] : memref<10x10x128xf32, #tpu.memory_space<vmem>>, vector<8x8x128xf32>
    %125 = vector.extract_strided_slice %80 {offsets = [6, 0], sizes = [1, 128], strides = [1, 1]} : vector<9x128xf32> to vector<1x128xf32>
    %126 = vector.shape_cast %125 : vector<1x128xf32> to vector<1x1x128xf32>
    %127 = vector.broadcast %126 : vector<1x1x128xf32> to vector<8x8x128xf32>
    %128 = arith.mulf %124, %127 : vector<8x8x128xf32>
    %cst_120 = arith.constant dense<0.000000e+00> : vector<8x8xf32>
    %129 = vector.multi_reduction <add>, %128, %cst_120 [2] : vector<8x8x128xf32> to vector<8x8xf32>
    %130 = arith.addf %123, %129 : vector<8x8xf32>
    %c2_121 = arith.constant 2 : index
    %c1_122 = arith.constant 1 : index
    %c0_123 = arith.constant 0 : index
    %131 = vector.load %arg14[%c2_121, %c1_122, %c0_123] : memref<10x10x128xf32, #tpu.memory_space<vmem>>, vector<8x8x128xf32>
    %132 = vector.extract_strided_slice %80 {offsets = [7, 0], sizes = [1, 128], strides = [1, 1]} : vector<9x128xf32> to vector<1x128xf32>
    %133 = vector.shape_cast %132 : vector<1x128xf32> to vector<1x1x128xf32>
    %134 = vector.broadcast %133 : vector<1x1x128xf32> to vector<8x8x128xf32>
    %135 = arith.mulf %131, %134 : vector<8x8x128xf32>
    %cst_124 = arith.constant dense<0.000000e+00> : vector<8x8xf32>
    %136 = vector.multi_reduction <add>, %135, %cst_124 [2] : vector<8x8x128xf32> to vector<8x8xf32>
    %137 = arith.addf %130, %136 : vector<8x8xf32>
    %c2_125 = arith.constant 2 : index
    %c2_126 = arith.constant 2 : index
    %c0_127 = arith.constant 0 : index
    %138 = vector.load %arg14[%c2_125, %c2_126, %c0_127] : memref<10x10x128xf32, #tpu.memory_space<vmem>>, vector<8x8x128xf32>
    %139 = vector.extract_strided_slice %80 {offsets = [8, 0], sizes = [1, 128], strides = [1, 1]} : vector<9x128xf32> to vector<1x128xf32>
    %140 = vector.shape_cast %139 : vector<1x128xf32> to vector<1x1x128xf32>
    %141 = vector.broadcast %140 : vector<1x1x128xf32> to vector<8x8x128xf32>
    %142 = arith.mulf %138, %141 : vector<8x8x128xf32>
    %cst_128 = arith.constant dense<0.000000e+00> : vector<8x8xf32>
    %143 = vector.multi_reduction <add>, %142, %cst_128 [2] : vector<8x8x128xf32> to vector<8x8xf32>
    %144 = arith.addf %137, %143 : vector<8x8xf32>
    %c0_129 = arith.constant 0 : index
    %145 = memref.load %arg8[%c0_129] : memref<1xf32, #tpu.memory_space<smem>>
    %146 = vector.broadcast %145 : f32 to vector<8x8xf32>
    %147 = arith.addf %144, %146 : vector<8x8xf32>
    %c0_130 = arith.constant 0 : index
    %c0_131 = arith.constant 0 : index
    %148 = vector.load %arg9[%c0_130, %c0_131] : memref<32x8xbf16, #tpu.memory_space<vmem>>, vector<32x8xbf16>
    %149 = arith.truncf %147 : vector<8x8xf32> to vector<8x8xbf16>
    %cst_132 = arith.constant dense<0.000000e+00> : vector<32x8xf32>
    %150 = tpu.matmul %148, %149, %cst_132 {dimension_numbers = #tpu.dot_dimension_numbers<[1], [0], [0], [1], [0, 0, 1, 1], [], []>} : vector<32x8xbf16>, vector<8x8xbf16>, vector<32x8xf32> -> vector<32x8xf32>
    %151 = arith.truncf %150 : vector<32x8xf32> to vector<32x8xbf16>
    %c0_133 = arith.constant 0 : index
    %c0_134 = arith.constant 0 : index
    %152 = vector.load %arg10[%c0_133, %c0_134] : memref<8x32xbf16, #tpu.memory_space<vmem>>, vector<8x32xbf16>
    %cst_135 = arith.constant dense<0.000000e+00> : vector<32x32xf32>
    %153 = tpu.matmul %151, %152, %cst_135 {dimension_numbers = #tpu.dot_dimension_numbers<[1], [0], [0], [1], [0, 0, 1, 1], [], []>} : vector<32x8xbf16>, vector<8x32xbf16>, vector<32x32xf32> -> vector<32x32xf32>
    %c0_136 = arith.constant 0 : index
    %c0_137 = arith.constant 0 : index
    %c0_138 = arith.constant 0 : index
    %154 = vector.load %arg12[%c0_136, %c0_137, %c0_138] : memref<1x32x32xf32, #tpu.memory_space<vmem>>, vector<1x32x32xf32>
    %155 = vector.shape_cast %154 : vector<1x32x32xf32> to vector<32x32xf32>
    %156 = vector.shape_cast %153 : vector<32x32xf32> to vector<1x32x32xf32>
    tpu.vector_store %arg12[%c0_136, %c0_137, %c0_138], %156 {strides = array<i32>} : memref<1x32x32xf32, #tpu.memory_space<vmem>>, vector<1x32x32xf32>,
    return
  }
  func.func @transform_0(%arg0: i32) -> (i32, i32, i32, i32) {
    %c0_i32 = arith.constant 0 : i32
    %c0_i32_0 = arith.constant 0 : i32
    %c0_i32_1 = arith.constant 0 : i32
    %c0_i32_2 = arith.constant 0 : i32
    return %arg0, %c0_i32, %c0_i32_0, %c0_i32_1 : i32, i32, i32, i32
  }
  func.func @transform_1(%arg0: i32) -> (i32, i32) {
    %c0_i32 = arith.constant 0 : i32
    %c0_i32_0 = arith.constant 0 : i32
    %c0_i32_1 = arith.constant 0 : i32
    return %c0_i32, %c0_i32_0 : i32, i32
  }
  func.func @transform_2(%arg0: i32) -> (i32, i32) {
    %c0_i32 = arith.constant 0 : i32
    %c0_i32_0 = arith.constant 0 : i32
    %c0_i32_1 = arith.constant 0 : i32
    return %c0_i32, %c0_i32_0 : i32, i32
  }
  func.func @transform_3(%arg0: i32) -> (i32, i32, i32) {
    %c0_i32 = arith.constant 0 : i32
    %c0_i32_0 = arith.constant 0 : i32
    %c0_i32_1 = arith.constant 0 : i32
    %c0_i32_2 = arith.constant 0 : i32
    return %c0_i32, %c0_i32_0, %c0_i32_1 : i32, i32, i32
  }
  func.func @transform_4(%arg0: i32) -> (i32, i32) {
    %c0_i32 = arith.constant 0 : i32
    %c0_i32_0 = arith.constant 0 : i32
    %c0_i32_1 = arith.constant 0 : i32
    return %c0_i32, %c0_i32_0 : i32, i32
  }
  func.func @transform_5(%arg0: i32) -> (i32, i32) {
    %c0_i32 = arith.constant 0 : i32
    %c0_i32_0 = arith.constant 0 : i32
    %c0_i32_1 = arith.constant 0 : i32
    return %c0_i32, %c0_i32_0 : i32, i32
  }
  func.func @transform_6(%arg0: i32) -> (i32, i32) {
    %c0_i32 = arith.constant 0 : i32
    %c0_i32_0 = arith.constant 0 : i32
    %c0_i32_1 = arith.constant 0 : i32
    return %c0_i32, %c0_i32_0 : i32, i32
  }
  func.func @transform_7(%arg0: i32) -> i32 {
    %c0_i32 = arith.constant 0 : i32
    %c0_i32_0 = arith.constant 0 : i32
    return %c0_i32 : i32
  }
  func.func @transform_8(%arg0: i32) -> (i32, i32) {
    %c0_i32 = arith.constant 0 : i32
    %c0_i32_0 = arith.constant 0 : i32
    %c0_i32_1 = arith.constant 0 : i32
    return %c0_i32, %c0_i32_0 : i32, i32
  }
  func.func @transform_9(%arg0: i32) -> (i32, i32) {
    %c0_i32 = arith.constant 0 : i32
    %c0_i32_0 = arith.constant 0 : i32
    %c0_i32_1 = arith.constant 0 : i32
    return %c0_i32, %c0_i32_0 : i32, i32
  }
  func.func @transform_10(%arg0: i32) -> (i32, i32, i32, i32) {
    %c0_i32 = arith.constant 0 : i32
    %c0_i32_0 = arith.constant 0 : i32
    %c0_i32_1 = arith.constant 0 : i32
    %c0_i32_2 = arith.constant 0 : i32
    return %arg0, %c0_i32, %c0_i32_0, %c0_i32_1 : i32, i32, i32, i32
  }
  func.func @transform_11(%arg0: i32) -> (i32, i32, i32) {
    %c0_i32 = arith.constant 0 : i32
    %c0_i32_0 = arith.constant 0 : i32
    %c0_i32_1 = arith.constant 0 : i32
    return %arg0, %c0_i32, %c0_i32_0 : i32, i32, i32
  }
}

</mosaic_0001>

<llo_original>
// kernel: isnet_edge_forward.1
$region0: #{isnet_edge_forward.1}
  #allocation0 [shape = 'u32[]', space=smem, size = 0x4, offset = 0x4, fixed_abs, tag = 'smem constant byte address 0x4 - core index']
  #allocation1 [shape = 'u32[72,128]{1,0:T(1,128)}', space=vmem, size = 0x9000, scoped, tag = 'internal scratch']
  #allocation2 [shape = 'f32[10,10,128]{2,1,0:T(8,128)}', space=vmem, size = 0x14000, scoped, tag = 'scratch operand']
  #allocation3 [shape = 'f32[10,10,128]{2,1,0:T(8,128)}', space=vmem, size = 0x14000, scoped, tag = 'scratch operand']
  #allocation4 [shape = 'f32[1]{0:T(128)S(6)}', space=smem, size = 0x200, scoped, tag = 'scoped memory for isnet_edge_forward.1']
  %s0 = inlined_call_operand.vmem [shape: bf16[2,8,8,256], index: 0, kind: input, shape index: {}]
  %s1 = inlined_call_operand.vmem [shape: bf16[256,128], index: 1, kind: input, shape index: {}]
  %s2 = inlined_call_operand.vmem [shape: f32[1,128], index: 2, kind: input, shape index: {}]
  %s3 = inlined_call_operand.vmem [shape: bf16[4,256,128], index: 3, kind: input, shape index: {}]
  %s4 = inlined_call_operand.vmem [shape: bf16[128,128], index: 4, kind: input, shape index: {}]
  %s5 = inlined_call_operand.vmem [shape: f32[1,128], index: 5, kind: input, shape index: {}]
  %s6 = inlined_call_operand.vmem [shape: f32[9,128], index: 6, kind: input, shape index: {}]
  %s7 = inlined_call_operand.<no memory space> [shape: f32[1], index: 7, kind: input, shape index: {}]
  %s8 = inlined_call_operand.vmem [shape: bf16[32,8], index: 8, kind: input, shape index: {}]
  %s9 = inlined_call_operand.vmem [shape: bf16[8,32], index: 9, kind: input, shape index: {}]
  %s10 = inlined_call_operand.hbm [shape: bf16[2,8,8,128], index: 10, kind: output, shape index: {0}]
  %s11 = inlined_call_operand.hbm [shape: f32[2,32,32], index: 11, kind: output, shape index: {1}]
  %12 = xla_tuple %s10, %s11
  %s13 = sld [smem:[#allocation0]]
  $region81: #{isnet_edge_forward.1} parent=0
    _
  %s15 = ssub.s32 1, %s13
  %s16 = scalar_select 0, %s15, %s13
  %17 = sst [smem:[#allocation4]] %s7
  $region1: #{isnet_edge_forward.1} parent=0
    #allocation5 [shape = 'u8[32768]{0}', space=vmem, size = 0x8000, scoped, tag = 'output window, operand 0']
    #allocation6 [shape = 's32[2]{0}', space=sflag, size = 0x8, scoped, tag = 'scoped memory for isnet_edge_forward.1']
    #allocation7 [shape = 'u8[32768]{0}', space=vmem, size = 0x8000, scoped, tag = 'output window, operand 1']
    #allocation8 [shape = 's32[2]{0}', space=sflag, size = 0x8, scoped, tag = 'scoped memory for isnet_edge_forward.1']
    %18 = vsyncpa [#allocation6], 0
    %s19 = scalar_lea.sflag [#allocation6], 1
    %20 = vsyncpa %s19, 0
    %21 = vsyncpa [#allocation8], 0
    %s22 = scalar_lea.sflag [#allocation8], 1
    %23 = vsyncpa %s22, 0
    loop: start=0, step=1, limit=4
    $region2: #{isnet_edge_forward.1} parent=1 // loop_pre_header
      _
    $region3: #{isnet_edge_forward.1} parent=1 // loop_header
      %s25 = sphi 0, %s29
      %p26 = scmp.ge.s32.totalorder %s25, 4
      %s35 = sphi 0, %s37
      %s38 = sphi 0, %s35
      %s39 = sphi 0, %s38
      %s55 = sphi 0, %s39
      %s59 = sphi 0, %s59
      %s61 = sphi 0, %s59
      %s62 = sphi 0, %s61
      %s76 = sphi 0, %s62
      %s80 = sphi 0, %s80
      %s82 = sphi 0, %s80
      %s83 = sphi 0, %s82
      %s97 = sphi 0, %s83
      %s101 = sphi 0, %s101
      %s103 = sphi 0, %s101
      %s104 = sphi 0, %s103
      %s118 = sphi 0, %s104
      %s122 = sphi 0, %s122
      %s124 = sphi 0, %s122
      %s125 = sphi 0, %s124
      %s139 = sphi 0, %s125
      %s143 = sphi 0, %s143
      %s145 = sphi 0, %s143
      %s146 = sphi 0, %s145
      %s160 = sphi 0, %s146
      %s164 = sphi 0, %s164
      %s166 = sphi 0, %s164
      %s167 = sphi 0, %s166
      %s181 = sphi 0, %s167
      %s185 = sphi 0, %s185
      %s187 = sphi 0, %s185
      %s188 = sphi 0, %s187
      %s202 = sphi 0, %s188
      %s206 = sphi 0, %s206
      %s208 = sphi 0, %s206
      %s209 = sphi 0, %s208
      %s223 = sphi 0, %s209
      %s227 = sphi 0, %s227
      %s229 = sphi 0, %s227
      %s230 = sphi 0, %s229
      %s244 = sphi 0, %s230
      %s250 = sphi 0, %s252
      %s253 = sphi 0, %s250
      %s254 = sphi 0, %s253
      %s270 = sphi 0, %s254
      %s276 = sphi 0, %s278
      %s279 = sphi 0, %s276
      %s280 = sphi 0, %s279
      %s296 = sphi 0, %s280
    $region4: #{isnet_edge_forward.1} parent=1 // loop_header_branch
      %28 = sbr.rel (%p26) target = $region8
    $region5: #{isnet_edge_forward.1} parent=1 // loop_body
      %s30 = ssub.s32 %s25, 1
      %s31 = ssub.s32 %s25, 2
      %s32 = sadd.s32 %s25, 1
      %s33 = ssub.s32 %s25, %s32
      %p34 = scmp.eq.s32.totalorder %s33, 0
      %s36 = sadd.s32 %s35, 1
      %s37 = scalar_select %p34, %s35, %s36
      %p40 = pneg %p34
      %p41 = scmp.eq.s32.totalorder %s25, 1
      %p42 = por %p40, %p41
      %p43 = scmp.ne.s32.totalorder %s35, %s38
      %p44 = scmp.eq.s32.totalorder %s25, 0
      %p45 = por %p43, %p44
      %p46 = scmp.ne.s32.totalorder %s35, %s38
      %p47 = scmp.eq.s32.totalorder %s30, 1
      %p48 = por %p46, %p47
      %p49 = scmp.ne.s32.totalorder %s38, %s39
      %p50 = scmp.eq.s32.totalorder %s30, 0
      %p51 = por %p49, %p50
      %p52 = scmp.ne.s32.totalorder %s38, %s39
      %p53 = scmp.eq.s32.totalorder %s31, 1
      %p54 = por %p52, %p53
      %p56 = scmp.ne.s32.totalorder %s39, %s55
      %p57 = scmp.eq.s32.totalorder %s31, 0
      %p58 = por %p56, %p57
      %s60 = sadd.s32 %s59, 1
      %p63 = scmp.eq.s32.totalorder %s25, 1
      %p64 = scmp.ne.s32.totalorder %s59, %s61
      %p65 = scmp.eq.s32.totalorder %s25, 0
      %p66 = por %p64, %p65
      %p67 = scmp.ne.s32.totalorder %s59, %s61
      %p68 = scmp.eq.s32.totalorder %s30, 1
      %p69 = por %p67, %p68
      %p70 = scmp.ne.s32.totalorder %s61, %s62
      %p71 = scmp.eq.s32.totalorder %s30, 0
      %p72 = por %p70, %p71
      %p73 = scmp.ne.s32.totalorder %s61, %s62
      %p74 = scmp.eq.s32.totalorder %s31, 1
      %p75 = por %p73, %p74
      %p77 = scmp.ne.s32.totalorder %s62, %s76
      %p78 = scmp.eq.s32.totalorder %s31, 0
      %p79 = por %p77, %p78
      %s81 = sadd.s32 %s80, 1
      %p84 = scmp.eq.s32.totalorder %s25, 1
      %p85 = scmp.ne.s32.totalorder %s80, %s82
      %p86 = scmp.eq.s32.totalorder %s25, 0
      %p87 = por %p85, %p86
      %p88 = scmp.ne.s32.totalorder %s80, %s82
      %p89 = scmp.eq.s32.totalorder %s30, 1
      %p90 = por %p88, %p89
      %p91 = scmp.ne.s32.totalorder %s82, %s83
      %p92 = scmp.eq.s32.totalorder %s30, 0
      %p93 = por %p91, %p92
      %p94 = scmp.ne.s32.totalorder %s82, %s83
      %p95 = scmp.eq.s32.totalorder %s31, 1
      %p96 = por %p94, %p95
      %p98 = scmp.ne.s32.totalorder %s83, %s97
      %p99 = scmp.eq.s32.totalorder %s31, 0
      %p100 = por %p98, %p99
      %s102 = sadd.s32 %s101, 1
      %p105 = scmp.eq.s32.totalorder %s25, 1
      %p106 = scmp.ne.s32.totalorder %s101, %s103
      %p107 = scmp.eq.s32.totalorder %s25, 0
      %p108 = por %p106, %p107
      %p109 = scmp.ne.s32.totalorder %s101, %s103
      %p110 = scmp.eq.s32.totalorder %s30, 1
      %p111 = por %p109, %p110
      %p112 = scmp.ne.s32.totalorder %s103, %s104
      %p113 = scmp.eq.s32.totalorder %s30, 0
      %p114 = por %p112, %p113
      %p115 = scmp.ne.s32.totalorder %s103, %s104
      %p116 = scmp.eq.s32.totalorder %s31, 1
      %p117 = por %p115, %p116
      %p119 = scmp.ne.s32.totalorder %s104, %s118
      %p120 = scmp.eq.s32.totalorder %s31, 0
      %p121 = por %p119, %p120
      %s123 = sadd.s32 %s122, 1
      %p126 = scmp.eq.s32.totalorder %s25, 1
      %p127 = scmp.ne.s32.totalorder %s122, %s124
      %p128 = scmp.eq.s32.totalorder %s25, 0
      %p129 = por %p127, %p128
      %p130 = scmp.ne.s32.totalorder %s122, %s124
      %p131 = scmp.eq.s32.totalorder %s30, 1
      %p132 = por %p130, %p131
      %p133 = scmp.ne.s32.totalorder %s124, %s125
      %p134 = scmp.eq.s32.totalorder %s30, 0
      %p135 = por %p133, %p134
      %p136 = scmp.ne.s32.totalorder %s124, %s125
      %p137 = scmp.eq.s32.totalorder %s31, 1
      %p138 = por %p136, %p137
      %p140 = scmp.ne.s32.totalorder %s125, %s139
      %p141 = scmp.eq.s32.totalorder %s31, 0
      %p142 = por %p140, %p141
      %s144 = sadd.s32 %s143, 1
      %p147 = scmp.eq.s32.totalorder %s25, 1
      %p148 = scmp.ne.s32.totalorder %s143, %s145
      %p149 = scmp.eq.s32.totalorder %s25, 0
      %p150 = por %p148, %p149
      %p151 = scmp.ne.s32.totalorder %s143, %s145
      %p152 = scmp.eq.s32.totalorder %s30, 1
      %p153 = por %p151, %p152
      %p154 = scmp.ne.s32.totalorder %s145, %s146
      %p155 = scmp.eq.s32.totalorder %s30, 0
      %p156 = por %p154, %p155
      %p157 = scmp.ne.s32.totalorder %s145, %s146
      %p158 = scmp.eq.s32.totalorder %s31, 1
      %p159 = por %p157, %p158
      %p161 = scmp.ne.s32.totalorder %s146, %s160
      %p162 = scmp.eq.s32.totalorder %s31, 0
      %p163 = por %p161, %p162
      %s165 = sadd.s32 %s164, 1
      %p168 = scmp.eq.s32.totalorder %s25, 1
      %p169 = scmp.ne.s32.totalorder %s164, %s166
      %p170 = scmp.eq.s32.totalorder %s25, 0
      %p171 = por %p169, %p170
      %p172 = scmp.ne.s32.totalorder %s164, %s166
      %p173 = scmp.eq.s32.totalorder %s30, 1
      %p174 = por %p172, %p173
      %p175 = scmp.ne.s32.totalorder %s166, %s167
      %p176 = scmp.eq.s32.totalorder %s30, 0
      %p177 = por %p175, %p176
      %p178 = scmp.ne.s32.totalorder %s166, %s167
      %p179 = scmp.eq.s32.totalorder %s31, 1
      %p180 = por %p178, %p179
      %p182 = scmp.ne.s32.totalorder %s167, %s181
      %p183 = scmp.eq.s32.totalorder %s31, 0
      %p184 = por %p182, %p183
      %s186 = sadd.s32 %s185, 1
      %p189 = scmp.eq.s32.totalorder %s25, 1
      %p190 = scmp.ne.s32.totalorder %s185, %s187
      %p191 = scmp.eq.s32.totalorder %s25, 0
      %p192 = por %p190, %p191
      %p193 = scmp.ne.s32.totalorder %s185, %s187
      %p194 = scmp.eq.s32.totalorder %s30, 1
      %p195 = por %p193, %p194
      %p196 = scmp.ne.s32.totalorder %s187, %s188
      %p197 = scmp.eq.s32.totalorder %s30, 0
      %p198 = por %p196, %p197
      %p199 = scmp.ne.s32.totalorder %s187, %s188
      %p200 = scmp.eq.s32.totalorder %s31, 1
      %p201 = por %p199, %p200
      %p203 = scmp.ne.s32.totalorder %s188, %s202
      %p204 = scmp.eq.s32.totalorder %s31, 0
      %p205 = por %p203, %p204
      %s207 = sadd.s32 %s206, 1
      %p210 = scmp.eq.s32.totalorder %s25, 1
      %p211 = scmp.ne.s32.totalorder %s206, %s208
      %p212 = scmp.eq.s32.totalorder %s25, 0
      %p213 = por %p211, %p212
      %p214 = scmp.ne.s32.totalorder %s206, %s208
      %p215 = scmp.eq.s32.totalorder %s30, 1
      %p216 = por %p214, %p215
      %p217 = scmp.ne.s32.totalorder %s208, %s209
      %p218 = scmp.eq.s32.totalorder %s30, 0
      %p219 = por %p217, %p218
      %p220 = scmp.ne.s32.totalorder %s208, %s209
      %p221 = scmp.eq.s32.totalorder %s31, 1
      %p222 = por %p220, %p221
      %p224 = scmp.ne.s32.totalorder %s209, %s223
      %p225 = scmp.eq.s32.totalorder %s31, 0
      %p226 = por %p224, %p225
      %s228 = sadd.s32 %s227, 1
      %p231 = scmp.eq.s32.totalorder %s25, 1
      %p232 = scmp.ne.s32.totalorder %s227, %s229
      %p233 = scmp.eq.s32.totalorder %s25, 0
      %p234 = por %p232, %p233
      %p235 = scmp.ne.s32.totalorder %s227, %s229
      %p236 = scmp.eq.s32.totalorder %s30, 1
      %p237 = por %p235, %p236
      %p238 = scmp.ne.s32.totalorder %s229, %s230
      %p239 = scmp.eq.s32.totalorder %s30, 0
      %p240 = por %p238, %p239
      %p241 = scmp.ne.s32.totalorder %s229, %s230
      %p242 = scmp.eq.s32.totalorder %s31, 1
      %p243 = por %p241, %p242
      %p245 = scmp.ne.s32.totalorder %s230, %s244
      %p246 = scmp.eq.s32.totalorder %s31, 0
      %p247 = por %p245, %p246
      %s248 = ssub.s32 %s25, %s32
      %p249 = scmp.eq.s32.totalorder %s248, 0
      %s251 = sadd.s32 %s250, 1
      %s252 = scalar_select %p249, %s250, %s251
      %p255 = pneg %p249
      %p256 = scmp.eq.s32.totalorder %s25, 1
      %p257 = por %p255, %p256
      %p258 = scmp.ne.s32.totalorder %s250, %s253
      %p259 = scmp.eq.s32.totalorder %s25, 0
      %p260 = por %p258, %p259
      %p261 = scmp.ne.s32.totalorder %s250, %s253
      %p262 = scmp.eq.s32.totalorder %s30, 1
      %p263 = por %p261, %p262
      %p264 = scmp.ne.s32.totalorder %s253, %s254
      %p265 = scmp.eq.s32.totalorder %s30, 0
      %p266 = por %p264, %p265
      %p267 = scmp.ne.s32.totalorder %s253, %s254
      %p268 = scmp.eq.s32.totalorder %s31, 1
      %p269 = por %p267, %p268
      %p271 = scmp.ne.s32.totalorder %s254, %s270
      %p272 = scmp.eq.s32.totalorder %s31, 0
      %p273 = por %p271, %p272
      %s274 = ssub.s32 %s25, %s32
      %p275 = scmp.eq.s32.totalorder %s274, 0
      %s277 = sadd.s32 %s276, 1
      %s278 = scalar_select %p275, %s276, %s277
      %p281 = pneg %p275
      %p282 = scmp.eq.s32.totalorder %s25, 1
      %p283 = por %p281, %p282
      %p284 = scmp.ne.s32.totalorder %s276, %s279
      %p285 = scmp.eq.s32.totalorder %s25, 0
      %p286 = por %p284, %p285
      %p287 = scmp.ne.s32.totalorder %s276, %s279
      %p288 = scmp.eq.s32.totalorder %s30, 1
      %p289 = por %p287, %p288
      %p290 = scmp.ne.s32.totalorder %s279, %s280
      %p291 = scmp.eq.s32.totalorder %s30, 0
      %p292 = por %p290, %p291
      %p293 = scmp.ne.s32.totalorder %s279, %s280
      %p294 = scmp.eq.s32.totalorder %s31, 1
      %p295 = por %p293, %p294
      %p297 = scmp.ne.s32.totalorder %s280, %s296
      %p298 = scmp.eq.s32.totalorder %s31, 0
      %p299 = por %p297, %p298
      %p300 = scmp.le.s32.totalorder 1, %s25
      %p301 = scmp.lt.s32.totalorder %s25, 3
      %p302 = pnand %p300, %p301
      %p303 = pneg %p302
      // Predicated region
      $region9: #{isnet_edge_forward.1} parent=5 // pred_check
        _
      $region10: #{isnet_edge_forward.1} parent=5 // pred_check_branch
        %305 = sbr.rel (%p302) target = $region12
      $region11: #{isnet_edge_forward.1} parent=5 // pred_region
        %s306 = ssub.s32 %s25, 1
        // Predicated region
        $region13: #{isnet_edge_forward.1} parent=11 // pred_check
          %p307 = pneg %p72
        $region14: #{isnet_edge_forward.1} parent=11 // pred_check_branch
          %309 = sbr.rel (%p307) target = $region16
        $region15: #{isnet_edge_forward.1} parent=11 // pred_region
          _
        $region16: #{isnet_edge_forward.1} parent=11 // pred_fallthru
          _
        // Predicated region
        $region17: #{isnet_edge_forward.1} parent=11 // pred_check
          %p310 = pneg %p93
        $region18: #{isnet_edge_forward.1} parent=11 // pred_check_branch
          %312 = sbr.rel (%p310) target = $region20
        $region19: #{isnet_edge_forward.1} parent=11 // pred_region
          _
        $region20: #{isnet_edge_forward.1} parent=11 // pred_fallthru
          _
        // Predicated region
        $region21: #{isnet_edge_forward.1} parent=11 // pred_check
          %p313 = pneg %p114
        $region22: #{isnet_edge_forward.1} parent=11 // pred_check_branch
          %315 = sbr.rel (%p313) target = $region24
        $region23: #{isnet_edge_forward.1} parent=11 // pred_region
          _
        $region24: #{isnet_edge_forward.1} parent=11 // pred_fallthru
          _
        // Predicated region
        $region25: #{isnet_edge_forward.1} parent=11 // pred_check
          %p316 = pneg %p135
        $region26: #{isnet_edge_forward.1} parent=11 // pred_check_branch
          %318 = sbr.rel (%p316) target = $region28
        $region27: #{isnet_edge_forward.1} parent=11 // pred_region
          _
        $region28: #{isnet_edge_forward.1} parent=11 // pred_fallthru
          _
        // Predicated region
        $region29: #{isnet_edge_forward.1} parent=11 // pred_check
          %p319 = pneg %p156
        $region30: #{isnet_edge_forward.1} parent=11 // pred_check_branch
          %321 = sbr.rel (%p319) target = $region32
        $region31: #{isnet_edge_forward.1} parent=11 // pred_region
          _
        $region32: #{isnet_edge_forward.1} parent=11 // pred_fallthru
          _
        // Predicated region
        $region33: #{isnet_edge_forward.1} parent=11 // pred_check
          %p322 = pneg %p177
        $region34: #{isnet_edge_forward.1} parent=11 // pred_check_branch
          %324 = sbr.rel (%p322) target = $region36
        $region35: #{isnet_edge_forward.1} parent=11 // pred_region
          _
        $region36: #{isnet_edge_forward.1} parent=11 // pred_fallthru
          _
        // Predicated region
        $region37: #{isnet_edge_forward.1} parent=11 // pred_check
          %p325 = pneg %p198
        $region38: #{isnet_edge_forward.1} parent=11 // pred_check_branch
          %327 = sbr.rel (%p325) target = $region40
        $region39: #{isnet_edge_forward.1} parent=11 // pred_region
          _
        $region40: #{isnet_edge_forward.1} parent=11 // pred_fallthru
          _
        // Predicated region
        $region41: #{isnet_edge_forward.1} parent=11 // pred_check
          %p328 = pneg %p219
        $region42: #{isnet_edge_forward.1} parent=11 // pred_check_branch
          %330 = sbr.rel (%p328) target = $region44
        $region43: #{isnet_edge_forward.1} parent=11 // pred_region
          _
        $region44: #{isnet_edge_forward.1} parent=11 // pred_fallthru
          _
        // Predicated region
        $region45: #{isnet_edge_forward.1} parent=11 // pred_check
          %p331 = pneg %p240
        $region46: #{isnet_edge_forward.1} parent=11 // pred_check_branch
          %333 = sbr.rel (%p331) target = $region48
        $region47: #{isnet_edge_forward.1} parent=11 // pred_region
          _
        $region48: #{isnet_edge_forward.1} parent=11 // pred_fallthru
          _
      $region12: #{isnet_edge_forward.1} parent=5 // pred_fallthru
        _
      %p334 = scmp.lt.s32.totalorder %s25, 2
      // Predicated region
      $region49: #{isnet_edge_forward.1} parent=5 // pred_check
        %p335 = pneg %p334
      $region50: #{isnet_edge_forward.1} parent=5 // pred_check_branch
        %337 = sbr.rel (%p335) target = $region52
      $region51: #{isnet_edge_forward.1} parent=5 // pred_region
        // Predicated region
        $region53: #{isnet_edge_forward.1} parent=51 // pred_check
          %p338 = pneg %p45
        $region54: #{isnet_edge_forward.1} parent=51 // pred_check_branch
          %340 = sbr.rel (%p338) target = $region56
        $region55: #{isnet_edge_forward.1} parent=51 // pred_region
          %p341 = scmp.lt.s32.totalorder %s25, 1
          %s342 = scalar_select %p341, %s25, 1
          %s343 = smul.addr %s342, 16
          %s344 = smul.addr %s343, 4
          %s345 = scalar_lea.vmem %s0, %s344
        $region56: #{isnet_edge_forward.1} parent=51 // pred_fallthru
          _
      $region52: #{isnet_edge_forward.1} parent=5 // pred_fallthru
        _
      %p346 = scmp.le.s32.totalorder 1, %s25
      %p347 = scmp.lt.s32.totalorder %s25, 3
      %p348 = pnand %p346, %p347
      %p349 = pneg %p348
      // Predicated region
      $region57: #{isnet_edge_forward.1} parent=5 // pred_check
        _
      $region58: #{isnet_edge_forward.1} parent=5 // pred_check_branch
        %351 = sbr.rel (%p348) target = $region60
      $region59: #{isnet_edge_forward.1} parent=5 // pred_region
        %s352 = ssub.s32 %s25, 1
        %p353 = scmp.lt.s32.totalorder %s30, 1
        %s354 = scalar_select %p353, %s30, 1
        %s355 = smul.addr %s354, 16
        %s356 = smul.addr %s355, 4
        %s357 = scalar_lea.vmem %s0, %s356
        %p358 = pneg %p51
        %p359 = pneg %p48
        %p360 = pneg %p72
        %p361 = pneg %p69
        %p362 = pneg %p93
        %p363 = pneg %p90
        %p364 = pneg %p114
        %p365 = pneg %p111
        %p366 = pneg %p135
        %p367 = pneg %p132
        %p368 = pneg %p156
        %p369 = pneg %p153
        %p370 = pneg %p177
        %p371 = pneg %p174
        %p372 = pneg %p198
        %p373 = pneg %p195
        %p374 = pneg %p219
        %p375 = pneg %p216
        %p376 = pneg %p240
        %p377 = pneg %p237
        %p378 = pneg %p266
        %p379 = pneg %p263
        %s380 = sand.u32 %s253, 1
        %s381 = scalar_lea.sflag [#allocation6], %s380
        %s382 = sand.u32 %s253, 1
        %s383 = smul.addr %s382, 32
        %s384 = scalar_lea.vmem [#allocation5], %s383
        %p385 = pneg %p292
        %p386 = pneg %p289
        %s387 = sand.u32 %s279, 1
        %s388 = scalar_lea.sflag [#allocation8], %s387
        %s389 = sand.u32 %s279, 1
        %s390 = smul.addr %s389, 32
        %s391 = scalar_lea.vmem [#allocation7], %s390
        %p392 = scmp.lt.s32.totalorder %s30, 1
        %s393 = scalar_select %p392, %s30, 1
        %s394 = smul.addr %s393, 16
        %s395 = smul.addr %s394, 4
        %s396 = scalar_lea.vmem %s0, %s395
        %398 = vst [vmem:[#allocation2] sm:$0xff] 0.0
        %399 = vst [vmem:[#allocation2 + $0x8] sm:$0x3] 0.0
        %s400 = scalar_lea.vmem [#allocation2], 144
        %401 = vst [vmem:[%s400] sm:$0xff] 0.0
        %402 = vst [vmem:[%s400 + $0x8] sm:$0x3] 0.0
        %403 = vst [vmem:[#allocation2] sm:$0x1] 0.0
        %404 = vst [vmem:[#allocation2 + $0x10] sm:$0x1] 0.0
        %405 = vst [vmem:[#allocation2 + $0x20] sm:$0x1] 0.0
        %406 = vst [vmem:[#allocation2 + $0x30] sm:$0x1] 0.0
        %407 = vst [vmem:[#allocation2 + $0x40] sm:$0x1] 0.0
        %408 = vst [vmem:[#allocation2 + $0x50] sm:$0x1] 0.0
        %409 = vst [vmem:[#allocation2 + $0x60] sm:$0x1] 0.0
        %410 = vst [vmem:[#allocation2 + $0x70] sm:$0x1] 0.0
        %411 = vst [vmem:[#allocation2 + $0x80] sm:$0x1] 0.0
        %412 = vst [vmem:[#allocation2 + $0x90] sm:$0x1] 0.0
        %413 = vst [vmem:[#allocation2 + $0x9] sm:$0x1] 0.0
        %414 = vst [vmem:[#allocation2 + $0x19] sm:$0x1] 0.0
        %415 = vst [vmem:[#allocation2 + $0x29] sm:$0x1] 0.0
        %416 = vst [vmem:[#allocation2 + $0x39] sm:$0x1] 0.0
        %417 = vst [vmem:[#allocation2 + $0x49] sm:$0x1] 0.0
        %418 = vst [vmem:[#allocation2 + $0x59] sm:$0x1] 0.0
        %419 = vst [vmem:[#allocation2 + $0x69] sm:$0x1] 0.0
        %420 = vst [vmem:[#allocation2 + $0x79] sm:$0x1] 0.0
        %421 = vst [vmem:[#allocation2 + $0x89] sm:$0x1] 0.0
        %422 = vst [vmem:[#allocation2 + $0x99] sm:$0x1] 0.0
        %423 = vst [vmem:[#allocation3] sm:$0xff] 0.0
        %424 = vst [vmem:[#allocation3 + $0x8] sm:$0x3] 0.0
        %s425 = scalar_lea.vmem [#allocation3], 144
        %426 = vst [vmem:[%s425] sm:$0xff] 0.0
        %427 = vst [vmem:[%s425 + $0x8] sm:$0x3] 0.0
        %428 = vst [vmem:[#allocation3] sm:$0x1] 0.0
        %429 = vst [vmem:[#allocation3 + $0x10] sm:$0x1] 0.0
        %430 = vst [vmem:[#allocation3 + $0x20] sm:$0x1] 0.0
        %431 = vst [vmem:[#allocation3 + $0x30] sm:$0x1] 0.0
        %432 = vst [vmem:[#allocation3 + $0x40] sm:$0x1] 0.0
        %433 = vst [vmem:[#allocation3 + $0x50] sm:$0x1] 0.0
        %434 = vst [vmem:[#allocation3 + $0x60] sm:$0x1] 0.0
        %435 = vst [vmem:[#allocation3 + $0x70] sm:$0x1] 0.0
        %436 = vst [vmem:[#allocation3 + $0x80] sm:$0x1] 0.0
        %437 = vst [vmem:[#allocation3 + $0x90] sm:$0x1] 0.0
        %438 = vst [vmem:[#allocation3 + $0x9] sm:$0x1] 0.0
        %439 = vst [vmem:[#allocation3 + $0x19] sm:$0x1] 0.0
        %440 = vst [vmem:[#allocation3 + $0x29] sm:$0x1] 0.0
        %441 = vst [vmem:[#allocation3 + $0x39] sm:$0x1] 0.0
        %442 = vst [vmem:[#allocation3 + $0x49] sm:$0x1] 0.0
        %443 = vst [vmem:[#allocation3 + $0x59] sm:$0x1] 0.0
        %444 = vst [vmem:[#allocation3 + $0x69] sm:$0x1] 0.0
        %445 = vst [vmem:[#allocation3 + $0x79] sm:$0x1] 0.0
        %446 = vst [vmem:[#allocation3 + $0x89] sm:$0x1] 0.0
        %447 = vst [vmem:[#allocation3 + $0x99] sm:$0x1] 0.0
        %v448 = vld [vmem:[%s396] sm:$0xff]
        %v449 = vld [vmem:[%s396 + $0x8] sm:$0xff]
        %v450 = vld [vmem:[%s396 + $0x10] sm:$0xff]
        %v451 = vld [vmem:[%s396 + $0x18] sm:$0xff]
        %v452 = vld [vmem:[%s396 + $0x20] sm:$0xff]
        %v453 = vld [vmem:[%s396 + $0x28] sm:$0xff]
        %v454 = vld [vmem:[%s396 + $0x30] sm:$0xff]
        %v455 = vld [vmem:[%s396 + $0x38] sm:$0xff]
        %v456 = vld [vmem:[%s1] sm:$0xf]
        %v457 = vld [vmem:[%s1 + $0x4] sm:$0xf]
        %v458 = vld [vmem:[%s1 + $0x8] sm:$0xf]
        %v459 = vld [vmem:[%s1 + $0xc] sm:$0xf]
        %v460 = vld [vmem:[%s1 + $0x10] sm:$0xf]
        %v461 = vld [vmem:[%s1 + $0x14] sm:$0xf]
        %v462 = vld [vmem:[%s1 + $0x18] sm:$0xf]
        %v463 = vld [vmem:[%s1 + $0x1c] sm:$0xf]
        %v464 = vld [vmem:[%s1 + $0x20] sm:$0xf]
        %v465 = vld [vmem:[%s1 + $0x24] sm:$0xf]
        %v466 = vld [vmem:[%s1 + $0x28] sm:$0xf]
        %v467 = vld [vmem:[%s1 + $0x2c] sm:$0xf]
        %v468 = vld [vmem:[%s1 + $0x30] sm:$0xf]
        %v469 = vld [vmem:[%s1 + $0x34] sm:$0xf]
        %v470 = vld [vmem:[%s1 + $0x38] sm:$0xf]
        %v471 = vld [vmem:[%s1 + $0x3c] sm:$0xf]
        %v472 = vld [vmem:[%s1 + $0x40] sm:$0xf]
        %v473 = vld [vmem:[%s1 + $0x44] sm:$0xf]
        %v474 = vld [vmem:[%s1 + $0x48] sm:$0xf]
        %v475 = vld [vmem:[%s1 + $0x4c] sm:$0xf]
        %v476 = vld [vmem:[%s1 + $0x50] sm:$0xf]
        %v477 = vld [vmem:[%s1 + $0x54] sm:$0xf]
        %v478 = vld [vmem:[%s1 + $0x58] sm:$0xf]
        %v479 = vld [vmem:[%s1 + $0x5c] sm:$0xf]
        %v480 = vld [vmem:[%s1 + $0x60] sm:$0xf]
        %v481 = vld [vmem:[%s1 + $0x64] sm:$0xf]
        %v482 = vld [vmem:[%s1 + $0x68] sm:$0xf]
        %v483 = vld [vmem:[%s1 + $0x6c] sm:$0xf]
        %v484 = vld [vmem:[%s1 + $0x70] sm:$0xf]
        %v485 = vld [vmem:[%s1 + $0x74] sm:$0xf]
        %v486 = vld [vmem:[%s1 + $0x78] sm:$0xf]
        %v487 = vld [vmem:[%s1 + $0x7c] sm:$0xf]
        %v488 = vld [vmem:[%s2] sm:$0x1]
        %v490 = vperm.slane %v488, 0
        %v500 = vunpack.c.l.b16 %v448
        %v501 = vunpack.c.h.b16 %v448
        %v502 = vunpack.c.l.b16 %v449
        %v503 = vunpack.c.h.b16 %v449
        %v504 = vunpack.c.l.b16 %v450
        %v505 = vunpack.c.h.b16 %v450
        %v506 = vunpack.c.l.b16 %v451
        %v507 = vunpack.c.h.b16 %v451
        %v508 = vunpack.c.l.b16 %v452
        %v509 = vunpack.c.h.b16 %v452
        %v510 = vunpack.c.l.b16 %v453
        %v511 = vunpack.c.h.b16 %v453
        %v512 = vunpack.c.l.b16 %v454
        %v513 = vunpack.c.h.b16 %v454
        %v514 = vunpack.c.l.b16 %v455
        %v515 = vunpack.c.h.b16 %v455
        %v516 = vpack.c.b16 %v502, %v500
        %v517 = vpack.c.b16 %v503, %v501
        %v518 = vpack.c.b16 %v506, %v504
        %v519 = vpack.c.b16 %v507, %v505
        %v520 = vpack.c.b16 %v510, %v508
        %v521 = vpack.c.b16 %v511, %v509
        %v522 = vpack.c.b16 %v514, %v512
        %v523 = vpack.c.b16 %v515, %v513
        %v564 = vunpack.c.l.b16 %v456
        %v565 = vunpack.c.l.b16 %v457
        %v566 = vunpack.c.l.b16 %v458
        %v567 = vunpack.c.l.b16 %v459
        %v568 = vunpack.c.l.b16 %v460
        %v569 = vunpack.c.l.b16 %v461
        %v570 = vunpack.c.l.b16 %v462
        %v571 = vunpack.c.l.b16 %v463
        %v572 = vunpack.c.l.b16 %v464
        %v573 = vunpack.c.l.b16 %v465
        %v574 = vunpack.c.l.b16 %v466
        %v575 = vunpack.c.l.b16 %v467
        %v576 = vunpack.c.l.b16 %v468
        %v577 = vunpack.c.l.b16 %v469
        %v578 = vunpack.c.l.b16 %v470
        %v579 = vunpack.c.l.b16 %v471
        %v580 = vunpack.c.l.b16 %v472
        %v581 = vunpack.c.l.b16 %v473
        %v582 = vunpack.c.l.b16 %v474
        %v583 = vunpack.c.l.b16 %v475
        %v584 = vunpack.c.l.b16 %v476
        %v585 = vunpack.c.l.b16 %v477
        %v586 = vunpack.c.l.b16 %v478
        %v587 = vunpack.c.l.b16 %v479
        %v588 = vunpack.c.l.b16 %v480
        %v589 = vunpack.c.l.b16 %v481
        %v590 = vunpack.c.l.b16 %v482
        %v591 = vunpack.c.l.b16 %v483
        %v592 = vunpack.c.l.b16 %v484
        %v593 = vunpack.c.l.b16 %v485
        %v594 = vunpack.c.l.b16 %v486
        %v595 = vunpack.c.l.b16 %v487
        %v596 = vpack.c.b16 %v565, %v564
        %v597 = vpack.c.b16 %v567, %v566
        %v598 = vpack.c.b16 %v569, %v568
        %v599 = vpack.c.b16 %v571, %v570
        %v600 = vpack.c.b16 %v573, %v572
        %v601 = vpack.c.b16 %v575, %v574
        %v602 = vpack.c.b16 %v577, %v576
        %v603 = vpack.c.b16 %v579, %v578
        %v604 = vpack.c.b16 %v581, %v580
        %v605 = vpack.c.b16 %v583, %v582
        %v606 = vpack.c.b16 %v585, %v584
        %v607 = vpack.c.b16 %v587, %v586
        %v608 = vpack.c.b16 %v589, %v588
        %v609 = vpack.c.b16 %v591, %v590
        %v610 = vpack.c.b16 %v593, %v592
        %v611 = vpack.c.b16 %v595, %v594
        %628 = vmatpush.bf16.msra.mxu0 %v603
        %629 = vmatpush.bf16.msra.mxu0 %v602
        %630 = vmatpush.bf16.msra.mxu0 %v601
        %631 = vmatpush.bf16.msra.mxu0 %v600
        %632 = vmatpush.bf16.msra.mxu0 %v599
        %633 = vmatpush.bf16.msra.mxu0 %v598
        %634 = vmatpush.bf16.msra.mxu0 %v597
        %635 = vmatpush.bf16.msra.mxu0 %v596
        %636 = vmatmul.bf16.gmra.mxu0 %v516
        %v637 = vpop.f32.mrf.mxu0
        %v638 = vadd.f32 %v490, %v637
        %v639 = vpop.f32.mrf.mxu0
        %v640 = vadd.f32 %v490, %v639
        %641 = vmatmul.bf16.gmra.mxu0 %v518
        %v642 = vpop.f32.mrf.mxu0
        %v643 = vadd.f32 %v490, %v642
        %v644 = vpop.f32.mrf.mxu0
        %v645 = vadd.f32 %v490, %v644
        %646 = vmatmul.bf16.gmra.mxu0 %v520
        %v647 = vpop.f32.mrf.mxu0
        %v648 = vadd.f32 %v490, %v647
        %v649 = vpop.f32.mrf.mxu0
        %v650 = vadd.f32 %v490, %v649
        %651 = vmatmul.bf16.gmra.mxu0 %v522
        %v652 = vpop.f32.mrf.mxu0
        %v653 = vadd.f32 %v490, %v652
        %v654 = vpop.f32.mrf.mxu0
        %v655 = vadd.f32 %v490, %v654
        %656 = vdwg.mxu0
        %657 = vmatpush.bf16.msra.mxu0 %v611
        %658 = vmatpush.bf16.msra.mxu0 %v610
        %659 = vmatpush.bf16.msra.mxu0 %v609
        %660 = vmatpush.bf16.msra.mxu0 %v608
        %661 = vmatpush.bf16.msra.mxu0 %v607
        %662 = vmatpush.bf16.msra.mxu0 %v606
        %663 = vmatpush.bf16.msra.mxu0 %v605
        %664 = vmatpush.bf16.msra.mxu0 %v604
        %665 = vmatmul.bf16.gmra.mxu0 %v517
        %v666 = vpop.f32.mrf.mxu0
        %v667 = vadd.f32 %v638, %v666
        %v668 = vpop.f32.mrf.mxu0
        %v669 = vadd.f32 %v640, %v668
        %670 = vmatmul.bf16.gmra.mxu0 %v519
        %v671 = vpop.f32.mrf.mxu0
        %v672 = vadd.f32 %v643, %v671
        %v673 = vpop.f32.mrf.mxu0
        %v674 = vadd.f32 %v645, %v673
        %675 = vmatmul.bf16.gmra.mxu0 %v521
        %v676 = vpop.f32.mrf.mxu0
        %v677 = vadd.f32 %v648, %v676
        %v678 = vpop.f32.mrf.mxu0
        %v679 = vadd.f32 %v650, %v678
        %680 = vmatmul.bf16.gmra.mxu0 %v523
        %v681 = vpop.f32.mrf.mxu0
        %v682 = vadd.f32 %v653, %v681
        %v683 = vpop.f32.mrf.mxu0
        %v684 = vadd.f32 %v655, %v683
        %685 = vdwg.mxu0
        %v686 = vmax.f32 %v667, 0.0
        %v687 = vmax.f32 %v669, 0.0
        %v688 = vmax.f32 %v672, 0.0
        %v689 = vmax.f32 %v674, 0.0
        %v690 = vmax.f32 %v677, 0.0
        %v691 = vmax.f32 %v679, 0.0
        %v692 = vmax.f32 %v682, 0.0
        %v693 = vmax.f32 %v684, 0.0
        %s694 = scalar_lea.vmem [#allocation2], 16
        %695 = vst [vmem:[%s694 + $0x1] sm:$0xff] %v686
        %696 = vst [vmem:[%s694 + $0x11] sm:$0xff] %v687
        %697 = vst [vmem:[%s694 + $0x21] sm:$0xff] %v688
        %698 = vst [vmem:[%s694 + $0x31] sm:$0xff] %v689
        %699 = vst [vmem:[%s694 + $0x41] sm:$0xff] %v690
        %700 = vst [vmem:[%s694 + $0x51] sm:$0xff] %v691
        %701 = vst [vmem:[%s694 + $0x61] sm:$0xff] %v692
        %702 = vst [vmem:[%s694 + $0x71] sm:$0xff] %v693
        %v703 = vld [vmem:[#allocation2] sm:$0xff]
        %v704 = vld [vmem:[#allocation2 + $0x10] sm:$0xff]
        %v705 = vld [vmem:[#allocation2 + $0x20] sm:$0xff]
        %v706 = vld [vmem:[#allocation2 + $0x30] sm:$0xff]
        %v707 = vld [vmem:[#allocation2 + $0x40] sm:$0xff]
        %v708 = vld [vmem:[#allocation2 + $0x50] sm:$0xff]
        %v709 = vld [vmem:[#allocation2 + $0x60] sm:$0xff]
        %v710 = vld [vmem:[#allocation2 + $0x70] sm:$0xff]
        %v711 = vld [vmem:[#allocation2 + $0x1] sm:$0xff]
        %v712 = vld [vmem:[#allocation2 + $0x11] sm:$0xff]
        %v713 = vld [vmem:[#allocation2 + $0x21] sm:$0xff]
        %v714 = vld [vmem:[#allocation2 + $0x31] sm:$0xff]
        %v715 = vld [vmem:[#allocation2 + $0x41] sm:$0xff]
        %v716 = vld [vmem:[#allocation2 + $0x51] sm:$0xff]
        %v717 = vld [vmem:[#allocation2 + $0x61] sm:$0xff]
        %v718 = vld [vmem:[#allocation2 + $0x71] sm:$0xff]
        %v719 = vpack.c.bf16 %v704, %v703
        %v720 = vpack.c.bf16 %v712, %v711
        %v721 = vpack.c.bf16 %v706, %v705
        %v722 = vpack.c.bf16 %v714, %v713
        %v723 = vpack.c.bf16 %v708, %v707
        %v724 = vpack.c.bf16 %v716, %v715
        %v725 = vpack.c.bf16 %v710, %v709
        %v726 = vpack.c.bf16 %v718, %v717
        %v727 = vld [vmem:[%s3] sm:$0xf]
        %v728 = vld [vmem:[%s3 + $0x4] sm:$0xf]
        %v729 = vld [vmem:[%s3 + $0x8] sm:$0xf]
        %v730 = vld [vmem:[%s3 + $0xc] sm:$0xf]
        %v731 = vld [vmem:[%s3 + $0x10] sm:$0xf]
        %v732 = vld [vmem:[%s3 + $0x14] sm:$0xf]
        %v733 = vld [vmem:[%s3 + $0x18] sm:$0xf]
        %v734 = vld [vmem:[%s3 + $0x1c] sm:$0xf]
        %v735 = vld [vmem:[%s3 + $0x20] sm:$0xf]
        %v736 = vld [vmem:[%s3 + $0x24] sm:$0xf]
        %v737 = vld [vmem:[%s3 + $0x28] sm:$0xf]
        %v738 = vld [vmem:[%s3 + $0x2c] sm:$0xf]
        %v739 = vld [vmem:[%s3 + $0x30] sm:$0xf]
        %v740 = vld [vmem:[%s3 + $0x34] sm:$0xf]
        %v741 = vld [vmem:[%s3 + $0x38] sm:$0xf]
        %v742 = vld [vmem:[%s3 + $0x3c] sm:$0xf]
        %v743 = vld [vmem:[%s3 + $0x40] sm:$0xf]
        %v744 = vld [vmem:[%s3 + $0x44] sm:$0xf]
        %v745 = vld [vmem:[%s3 + $0x48] sm:$0xf]
        %v746 = vld [vmem:[%s3 + $0x4c] sm:$0xf]
        %v747 = vld [vmem:[%s3 + $0x50] sm:$0xf]
        %v748 = vld [vmem:[%s3 + $0x54] sm:$0xf]
        %v749 = vld [vmem:[%s3 + $0x58] sm:$0xf]
        %v750 = vld [vmem:[%s3 + $0x5c] sm:$0xf]
        %v751 = vld [vmem:[%s3 + $0x60] sm:$0xf]
        %v752 = vld [vmem:[%s3 + $0x64] sm:$0xf]
        %v753 = vld [vmem:[%s3 + $0x68] sm:$0xf]
        %v754 = vld [vmem:[%s3 + $0x6c] sm:$0xf]
        %v755 = vld [vmem:[%s3 + $0x70] sm:$0xf]
        %v756 = vld [vmem:[%s3 + $0x74] sm:$0xf]
        %v757 = vld [vmem:[%s3 + $0x78] sm:$0xf]
        %v758 = vld [vmem:[%s3 + $0x7c] sm:$0xf]
        %v759 = vld [vmem:[#allocation2 + $0x2] sm:$0xff]
        %v760 = vld [vmem:[#allocation2 + $0x12] sm:$0xff]
        %v761 = vld [vmem:[#allocation2 + $0x22] sm:$0xff]
        %v762 = vld [vmem:[#allocation2 + $0x32] sm:$0xff]
        %v763 = vld [vmem:[#allocation2 + $0x42] sm:$0xff]
        %v764 = vld [vmem:[#allocation2 + $0x52] sm:$0xff]
        %v765 = vld [vmem:[#allocation2 + $0x62] sm:$0xff]
        %v766 = vld [vmem:[#allocation2 + $0x72] sm:$0xff]
        %v767 = vld [vmem:[%s694] sm:$0xff]
        %v768 = vld [vmem:[%s694 + $0x10] sm:$0xff]
        %v769 = vld [vmem:[%s694 + $0x20] sm:$0xff]
        %v770 = vld [vmem:[%s694 + $0x30] sm:$0xff]
        %v771 = vld [vmem:[%s694 + $0x40] sm:$0xff]
        %v772 = vld [vmem:[%s694 + $0x50] sm:$0xff]
        %v773 = vld [vmem:[%s694 + $0x60] sm:$0xff]
        %v774 = vld [vmem:[%s694 + $0x70] sm:$0xff]
        %v775 = vpack.c.bf16 %v760, %v759
        %v776 = vpack.c.bf16 %v768, %v767
        %v777 = vpack.c.bf16 %v762, %v761
        %v778 = vpack.c.bf16 %v770, %v769
        %v779 = vpack.c.bf16 %v764, %v763
        %v780 = vpack.c.bf16 %v772, %v771
        %v781 = vpack.c.bf16 %v766, %v765
        %v782 = vpack.c.bf16 %v774, %v773
        %s783 = scalar_lea.vmem %s3, 128
        %v784 = vld [vmem:[%s783] sm:$0xf]
        %v785 = vld [vmem:[%s783 + $0x4] sm:$0xf]
        %v786 = vld [vmem:[%s783 + $0x8] sm:$0xf]
        %v787 = vld [vmem:[%s783 + $0xc] sm:$0xf]
        %v788 = vld [vmem:[%s783 + $0x10] sm:$0xf]
        %v789 = vld [vmem:[%s783 + $0x14] sm:$0xf]
        %v790 = vld [vmem:[%s783 + $0x18] sm:$0xf]
        %v791 = vld [vmem:[%s783 + $0x1c] sm:$0xf]
        %v792 = vld [vmem:[%s783 + $0x20] sm:$0xf]
        %v793 = vld [vmem:[%s783 + $0x24] sm:$0xf]
        %v794 = vld [vmem:[%s783 + $0x28] sm:$0xf]
        %v795 = vld [vmem:[%s783 + $0x2c] sm:$0xf]
        %v796 = vld [vmem:[%s783 + $0x30] sm:$0xf]
        %v797 = vld [vmem:[%s783 + $0x34] sm:$0xf]
        %v798 = vld [vmem:[%s783 + $0x38] sm:$0xf]
        %v799 = vld [vmem:[%s783 + $0x3c] sm:$0xf]
        %v800 = vld [vmem:[%s783 + $0x40] sm:$0xf]
        %v801 = vld [vmem:[%s783 + $0x44] sm:$0xf]
        %v802 = vld [vmem:[%s783 + $0x48] sm:$0xf]
        %v803 = vld [vmem:[%s783 + $0x4c] sm:$0xf]
        %v804 = vld [vmem:[%s783 + $0x50] sm:$0xf]
        %v805 = vld [vmem:[%s783 + $0x54] sm:$0xf]
        %v806 = vld [vmem:[%s783 + $0x58] sm:$0xf]
        %v807 = vld [vmem:[%s783 + $0x5c] sm:$0xf]
        %v808 = vld [vmem:[%s783 + $0x60] sm:$0xf]
        %v809 = vld [vmem:[%s783 + $0x64] sm:$0xf]
        %v810 = vld [vmem:[%s783 + $0x68] sm:$0xf]
        %v811 = vld [vmem:[%s783 + $0x6c] sm:$0xf]
        %v812 = vld [vmem:[%s783 + $0x70] sm:$0xf]
        %v813 = vld [vmem:[%s783 + $0x74] sm:$0xf]
        %v814 = vld [vmem:[%s783 + $0x78] sm:$0xf]
        %v815 = vld [vmem:[%s783 + $0x7c] sm:$0xf]
        %v848 = vunpack.c.l.b16 %v784
        %v849 = vunpack.c.l.b16 %v785
        %v850 = vunpack.c.l.b16 %v786
        %v851 = vunpack.c.l.b16 %v787
        %v852 = vunpack.c.l.b16 %v788
        %v853 = vunpack.c.l.b16 %v789
        %v854 = vunpack.c.l.b16 %v790
        %v855 = vunpack.c.l.b16 %v791
        %v856 = vunpack.c.l.b16 %v792
        %v857 = vunpack.c.l.b16 %v793
        %v858 = vunpack.c.l.b16 %v794
        %v859 = vunpack.c.l.b16 %v795
        %v860 = vunpack.c.l.b16 %v796
        %v861 = vunpack.c.l.b16 %v797
        %v862 = vunpack.c.l.b16 %v798
        %v863 = vunpack.c.l.b16 %v799
        %v864 = vunpack.c.l.b16 %v800
        %v865 = vunpack.c.l.b16 %v801
        %v866 = vunpack.c.l.b16 %v802
        %v867 = vunpack.c.l.b16 %v803
        %v868 = vunpack.c.l.b16 %v804
        %v869 = vunpack.c.l.b16 %v805
        %v870 = vunpack.c.l.b16 %v806
        %v871 = vunpack.c.l.b16 %v807
        %v872 = vunpack.c.l.b16 %v808
        %v873 = vunpack.c.l.b16 %v809
        %v874 = vunpack.c.l.b16 %v810
        %v875 = vunpack.c.l.b16 %v811
        %v876 = vunpack.c.l.b16 %v812
        %v877 = vunpack.c.l.b16 %v813
        %v878 = vunpack.c.l.b16 %v814
        %v879 = vunpack.c.l.b16 %v815
        %v880 = vpack.c.b16 %v849, %v848
        %v881 = vpack.c.b16 %v851, %v850
        %v882 = vpack.c.b16 %v853, %v852
        %v883 = vpack.c.b16 %v855, %v854
        %v884 = vpack.c.b16 %v857, %v856
        %v885 = vpack.c.b16 %v859, %v858
        %v886 = vpack.c.b16 %v861, %v860
        %v887 = vpack.c.b16 %v863, %v862
        %v888 = vpack.c.b16 %v865, %v864
        %v889 = vpack.c.b16 %v867, %v866
        %v890 = vpack.c.b16 %v869, %v868
        %v891 = vpack.c.b16 %v871, %v870
        %v892 = vpack.c.b16 %v873, %v872
        %v893 = vpack.c.b16 %v875, %v874
        %v894 = vpack.c.b16 %v877, %v876
        %v895 = vpack.c.b16 %v879, %v878
        %912 = vmatpush.bf16.msra.mxu0 %v887
        %913 = vmatpush.bf16.msra.mxu0 %v886
        %914 = vmatpush.bf16.msra.mxu0 %v885
        %915 = vmatpush.bf16.msra.mxu0 %v884
        %916 = vmatpush.bf16.msra.mxu0 %v883
        %917 = vmatpush.bf16.msra.mxu0 %v882
        %918 = vmatpush.bf16.msra.mxu0 %v881
        %919 = vmatpush.bf16.msra.mxu0 %v880
        %920 = vmatmul.bf16.gmra.mxu0 %v775
        %v921 = vpop.f32.mrf.mxu0
        %v922 = vadd.f32 0.0, %v921
        %v923 = vpop.f32.mrf.mxu0
        %v924 = vadd.f32 0.0, %v923
        %925 = vmatmul.bf16.gmra.mxu0 %v777
        %v926 = vpop.f32.mrf.mxu0
        %v927 = vadd.f32 0.0, %v926
        %v928 = vpop.f32.mrf.mxu0
        %v929 = vadd.f32 0.0, %v928
        %930 = vmatmul.bf16.gmra.mxu0 %v779
        %v931 = vpop.f32.mrf.mxu0
        %v932 = vadd.f32 0.0, %v931
        %v933 = vpop.f32.mrf.mxu0
        %v934 = vadd.f32 0.0, %v933
        %935 = vmatmul.bf16.gmra.mxu0 %v781
        %v936 = vpop.f32.mrf.mxu0
        %v937 = vadd.f32 0.0, %v936
        %v938 = vpop.f32.mrf.mxu0
        %v939 = vadd.f32 0.0, %v938
        %940 = vdwg.mxu0
        %941 = vmatpush.bf16.msra.mxu0 %v895
        %942 = vmatpush.bf16.msra.mxu0 %v894
        %943 = vmatpush.bf16.msra.mxu0 %v893
        %944 = vmatpush.bf16.msra.mxu0 %v892
        %945 = vmatpush.bf16.msra.mxu0 %v891
        %946 = vmatpush.bf16.msra.mxu0 %v890
        %947 = vmatpush.bf16.msra.mxu0 %v889
        %948 = vmatpush.bf16.msra.mxu0 %v888
        %949 = vmatmul.bf16.gmra.mxu0 %v776
        %v950 = vpop.f32.mrf.mxu0
        %v951 = vadd.f32 %v922, %v950
        %v952 = vpop.f32.mrf.mxu0
        %v953 = vadd.f32 %v924, %v952
        %954 = vmatmul.bf16.gmra.mxu0 %v778
        %v955 = vpop.f32.mrf.mxu0
        %v956 = vadd.f32 %v927, %v955
        %v957 = vpop.f32.mrf.mxu0
        %v958 = vadd.f32 %v929, %v957
        %959 = vmatmul.bf16.gmra.mxu0 %v780
        %v960 = vpop.f32.mrf.mxu0
        %v961 = vadd.f32 %v932, %v960
        %v962 = vpop.f32.mrf.mxu0
        %v963 = vadd.f32 %v934, %v962
        %964 = vmatmul.bf16.gmra.mxu0 %v782
        %v965 = vpop.f32.mrf.mxu0
        %v966 = vadd.f32 %v937, %v965
        %v967 = vpop.f32.mrf.mxu0
        %v968 = vadd.f32 %v939, %v967
        %969 = vdwg.mxu0
        %v1002 = vunpack.c.l.b16 %v727
        %v1003 = vunpack.c.l.b16 %v728
        %v1004 = vunpack.c.l.b16 %v729
        %v1005 = vunpack.c.l.b16 %v730
        %v1006 = vunpack.c.l.b16 %v731
        %v1007 = vunpack.c.l.b16 %v732
        %v1008 = vunpack.c.l.b16 %v733
        %v1009 = vunpack.c.l.b16 %v734
        %v1010 = vunpack.c.l.b16 %v735
        %v1011 = vunpack.c.l.b16 %v736
        %v1012 = vunpack.c.l.b16 %v737
        %v1013 = vunpack.c.l.b16 %v738
        %v1014 = vunpack.c.l.b16 %v739
        %v1015 = vunpack.c.l.b16 %v740
        %v1016 = vunpack.c.l.b16 %v741
        %v1017 = vunpack.c.l.b16 %v742
        %v1018 = vunpack.c.l.b16 %v743
        %v1019 = vunpack.c.l.b16 %v744
        %v1020 = vunpack.c.l.b16 %v745
        %v1021 = vunpack.c.l.b16 %v746
        %v1022 = vunpack.c.l.b16 %v747
        %v1023 = vunpack.c.l.b16 %v748
        %v1024 = vunpack.c.l.b16 %v749
        %v1025 = vunpack.c.l.b16 %v750
        %v1026 = vunpack.c.l.b16 %v751
        %v1027 = vunpack.c.l.b16 %v752
        %v1028 = vunpack.c.l.b16 %v753
        %v1029 = vunpack.c.l.b16 %v754
        %v1030 = vunpack.c.l.b16 %v755
        %v1031 = vunpack.c.l.b16 %v756
        %v1032 = vunpack.c.l.b16 %v757
        %v1033 = vunpack.c.l.b16 %v758
        %v1034 = vpack.c.b16 %v1003, %v1002
        %v1035 = vpack.c.b16 %v1005, %v1004
        %v1036 = vpack.c.b16 %v1007, %v1006
        %v1037 = vpack.c.b16 %v1009, %v1008
        %v1038 = vpack.c.b16 %v1011, %v1010
        %v1039 = vpack.c.b16 %v1013, %v1012
        %v1040 = vpack.c.b16 %v1015, %v1014
        %v1041 = vpack.c.b16 %v1017, %v1016
        %v1042 = vpack.c.b16 %v1019, %v1018
        %v1043 = vpack.c.b16 %v1021, %v1020
        %v1044 = vpack.c.b16 %v1023, %v1022
        %v1045 = vpack.c.b16 %v1025, %v1024
        %v1046 = vpack.c.b16 %v1027, %v1026
        %v1047 = vpack.c.b16 %v1029, %v1028
        %v1048 = vpack.c.b16 %v1031, %v1030
        %v1049 = vpack.c.b16 %v1033, %v1032
        %1066 = vmatpush.bf16.msra.mxu0 %v1041
        %1067 = vmatpush.bf16.msra.mxu0 %v1040
        %1068 = vmatpush.bf16.msra.mxu0 %v1039
        %1069 = vmatpush.bf16.msra.mxu0 %v1038
        %1070 = vmatpush.bf16.msra.mxu0 %v1037
        %1071 = vmatpush.bf16.msra.mxu0 %v1036
        %1072 = vmatpush.bf16.msra.mxu0 %v1035
        %1073 = vmatpush.bf16.msra.mxu0 %v1034
        %1074 = vmatmul.bf16.gmra.mxu0 %v719
        %v1075 = vpop.f32.mrf.mxu0
        %v1076 = vadd.f32 %v951, %v1075
        %v1077 = vpop.f32.mrf.mxu0
        %v1078 = vadd.f32 %v953, %v1077
        %1079 = vmatmul.bf16.gmra.mxu0 %v721
        %v1080 = vpop.f32.mrf.mxu0
        %v1081 = vadd.f32 %v956, %v1080
        %v1082 = vpop.f32.mrf.mxu0
        %v1083 = vadd.f32 %v958, %v1082
        %1084 = vmatmul.bf16.gmra.mxu0 %v723
        %v1085 = vpop.f32.mrf.mxu0
        %v1086 = vadd.f32 %v961, %v1085
        %v1087 = vpop.f32.mrf.mxu0
        %v1088 = vadd.f32 %v963, %v1087
        %1089 = vmatmul.bf16.gmra.mxu0 %v725
        %v1090 = vpop.f32.mrf.mxu0
        %v1091 = vadd.f32 %v966, %v1090
        %v1092 = vpop.f32.mrf.mxu0
        %v1093 = vadd.f32 %v968, %v1092
        %1094 = vdwg.mxu0
        %1095 = vmatpush.bf16.msra.mxu0 %v1049
        %1096 = vmatpush.bf16.msra.mxu0 %v1048
        %1097 = vmatpush.bf16.msra.mxu0 %v1047
        %1098 = vmatpush.bf16.msra.mxu0 %v1046
        %1099 = vmatpush.bf16.msra.mxu0 %v1045
        %1100 = vmatpush.bf16.msra.mxu0 %v1044
        %1101 = vmatpush.bf16.msra.mxu0 %v1043
        %1102 = vmatpush.bf16.msra.mxu0 %v1042
        %1103 = vmatmul.bf16.gmra.mxu0 %v720
        %v1104 = vpop.f32.mrf.mxu0
        %v1105 = vadd.f32 %v1076, %v1104
        %v1106 = vpop.f32.mrf.mxu0
        %v1107 = vadd.f32 %v1078, %v1106
        %1108 = vmatmul.bf16.gmra.mxu0 %v722
        %v1109 = vpop.f32.mrf.mxu0
        %v1110 = vadd.f32 %v1081, %v1109
        %v1111 = vpop.f32.mrf.mxu0
        %v1112 = vadd.f32 %v1083, %v1111
        %1113 = vmatmul.bf16.gmra.mxu0 %v724
        %v1114 = vpop.f32.mrf.mxu0
        %v1115 = vadd.f32 %v1086, %v1114
        %v1116 = vpop.f32.mrf.mxu0
        %v1117 = vadd.f32 %v1088, %v1116
        %1118 = vmatmul.bf16.gmra.mxu0 %v726
        %v1119 = vpop.f32.mrf.mxu0
        %v1120 = vadd.f32 %v1091, %v1119
        %v1121 = vpop.f32.mrf.mxu0
        %v1122 = vadd.f32 %v1093, %v1121
        %1123 = vdwg.mxu0
        %v1124 = vld [vmem:[%s694 + $0x1] sm:$0xff]
        %v1125 = vld [vmem:[%s694 + $0x11] sm:$0xff]
        %v1126 = vld [vmem:[%s694 + $0x21] sm:$0xff]
        %v1127 = vld [vmem:[%s694 + $0x31] sm:$0xff]
        %v1128 = vld [vmem:[%s694 + $0x41] sm:$0xff]
        %v1129 = vld [vmem:[%s694 + $0x51] sm:$0xff]
        %v1130 = vld [vmem:[%s694 + $0x61] sm:$0xff]
        %v1131 = vld [vmem:[%s694 + $0x71] sm:$0xff]
        %v1132 = vld [vmem:[%s694 + $0x2] sm:$0xff]
        %v1133 = vld [vmem:[%s694 + $0x12] sm:$0xff]
        %v1134 = vld [vmem:[%s694 + $0x22] sm:$0xff]
        %v1135 = vld [vmem:[%s694 + $0x32] sm:$0xff]
        %v1136 = vld [vmem:[%s694 + $0x42] sm:$0xff]
        %v1137 = vld [vmem:[%s694 + $0x52] sm:$0xff]
        %v1138 = vld [vmem:[%s694 + $0x62] sm:$0xff]
        %v1139 = vld [vmem:[%s694 + $0x72] sm:$0xff]
        %v1140 = vpack.c.bf16 %v1125, %v1124
        %v1141 = vpack.c.bf16 %v1133, %v1132
        %v1142 = vpack.c.bf16 %v1127, %v1126
        %v1143 = vpack.c.bf16 %v1135, %v1134
        %v1144 = vpack.c.bf16 %v1129, %v1128
        %v1145 = vpack.c.bf16 %v1137, %v1136
        %v1146 = vpack.c.bf16 %v1131, %v1130
        %v1147 = vpack.c.bf16 %v1139, %v1138
        %s1148 = scalar_lea.vmem %s3, 256
        %v1149 = vld [vmem:[%s1148] sm:$0xf]
        %v1150 = vld [vmem:[%s1148 + $0x4] sm:$0xf]
        %v1151 = vld [vmem:[%s1148 + $0x8] sm:$0xf]
        %v1152 = vld [vmem:[%s1148 + $0xc] sm:$0xf]
        %v1153 = vld [vmem:[%s1148 + $0x10] sm:$0xf]
        %v1154 = vld [vmem:[%s1148 + $0x14] sm:$0xf]
        %v1155 = vld [vmem:[%s1148 + $0x18] sm:$0xf]
        %v1156 = vld [vmem:[%s1148 + $0x1c] sm:$0xf]
        %v1157 = vld [vmem:[%s1148 + $0x20] sm:$0xf]
        %v1158 = vld [vmem:[%s1148 + $0x24] sm:$0xf]
        %v1159 = vld [vmem:[%s1148 + $0x28] sm:$0xf]
        %v1160 = vld [vmem:[%s1148 + $0x2c] sm:$0xf]
        %v1161 = vld [vmem:[%s1148 + $0x30] sm:$0xf]
        %v1162 = vld [vmem:[%s1148 + $0x34] sm:$0xf]
        %v1163 = vld [vmem:[%s1148 + $0x38] sm:$0xf]
        %v1164 = vld [vmem:[%s1148 + $0x3c] sm:$0xf]
        %v1165 = vld [vmem:[%s1148 + $0x40] sm:$0xf]
        %v1166 = vld [vmem:[%s1148 + $0x44] sm:$0xf]
        %v1167 = vld [vmem:[%s1148 + $0x48] sm:$0xf]
        %v1168 = vld [vmem:[%s1148 + $0x4c] sm:$0xf]
        %v1169 = vld [vmem:[%s1148 + $0x50] sm:$0xf]
        %v1170 = vld [vmem:[%s1148 + $0x54] sm:$0xf]
        %v1171 = vld [vmem:[%s1148 + $0x58] sm:$0xf]
        %v1172 = vld [vmem:[%s1148 + $0x5c] sm:$0xf]
        %v1173 = vld [vmem:[%s1148 + $0x60] sm:$0xf]
        %v1174 = vld [vmem:[%s1148 + $0x64] sm:$0xf]
        %v1175 = vld [vmem:[%s1148 + $0x68] sm:$0xf]
        %v1176 = vld [vmem:[%s1148 + $0x6c] sm:$0xf]
        %v1177 = vld [vmem:[%s1148 + $0x70] sm:$0xf]
        %v1178 = vld [vmem:[%s1148 + $0x74] sm:$0xf]
        %v1179 = vld [vmem:[%s1148 + $0x78] sm:$0xf]
        %v1180 = vld [vmem:[%s1148 + $0x7c] sm:$0xf]
        %v1213 = vunpack.c.l.b16 %v1149
        %v1214 = vunpack.c.l.b16 %v1150
        %v1215 = vunpack.c.l.b16 %v1151
        %v1216 = vunpack.c.l.b16 %v1152
        %v1217 = vunpack.c.l.b16 %v1153
        %v1218 = vunpack.c.l.b16 %v1154
        %v1219 = vunpack.c.l.b16 %v1155
        %v1220 = vunpack.c.l.b16 %v1156
        %v1221 = vunpack.c.l.b16 %v1157
        %v1222 = vunpack.c.l.b16 %v1158
        %v1223 = vunpack.c.l.b16 %v1159
        %v1224 = vunpack.c.l.b16 %v1160
        %v1225 = vunpack.c.l.b16 %v1161
        %v1226 = vunpack.c.l.b16 %v1162
        %v1227 = vunpack.c.l.b16 %v1163
        %v1228 = vunpack.c.l.b16 %v1164
        %v1229 = vunpack.c.l.b16 %v1165
        %v1230 = vunpack.c.l.b16 %v1166
        %v1231 = vunpack.c.l.b16 %v1167
        %v1232 = vunpack.c.l.b16 %v1168
        %v1233 = vunpack.c.l.b16 %v1169
        %v1234 = vunpack.c.l.b16 %v1170
        %v1235 = vunpack.c.l.b16 %v1171
        %v1236 = vunpack.c.l.b16 %v1172
        %v1237 = vunpack.c.l.b16 %v1173
        %v1238 = vunpack.c.l.b16 %v1174
        %v1239 = vunpack.c.l.b16 %v1175
        %v1240 = vunpack.c.l.b16 %v1176
        %v1241 = vunpack.c.l.b16 %v1177
        %v1242 = vunpack.c.l.b16 %v1178
        %v1243 = vunpack.c.l.b16 %v1179
        %v1244 = vunpack.c.l.b16 %v1180
        %v1245 = vpack.c.b16 %v1214, %v1213
        %v1246 = vpack.c.b16 %v1216, %v1215
        %v1247 = vpack.c.b16 %v1218, %v1217
        %v1248 = vpack.c.b16 %v1220, %v1219
        %v1249 = vpack.c.b16 %v1222, %v1221
        %v1250 = vpack.c.b16 %v1224, %v1223
        %v1251 = vpack.c.b16 %v1226, %v1225
        %v1252 = vpack.c.b16 %v1228, %v1227
        %v1253 = vpack.c.b16 %v1230, %v1229
        %v1254 = vpack.c.b16 %v1232, %v1231
        %v1255 = vpack.c.b16 %v1234, %v1233
        %v1256 = vpack.c.b16 %v1236, %v1235
        %v1257 = vpack.c.b16 %v1238, %v1237
        %v1258 = vpack.c.b16 %v1240, %v1239
        %v1259 = vpack.c.b16 %v1242, %v1241
        %v1260 = vpack.c.b16 %v1244, %v1243
        %1277 = vmatpush.bf16.msra.mxu0 %v1252
        %1278 = vmatpush.bf16.msra.mxu0 %v1251
        %1279 = vmatpush.bf16.msra.mxu0 %v1250
        %1280 = vmatpush.bf16.msra.mxu0 %v1249
        %1281 = vmatpush.bf16.msra.mxu0 %v1248
        %1282 = vmatpush.bf16.msra.mxu0 %v1247
        %1283 = vmatpush.bf16.msra.mxu0 %v1246
        %1284 = vmatpush.bf16.msra.mxu0 %v1245
        %1285 = vmatmul.bf16.gmra.mxu0 %v1140
        %v1286 = vpop.f32.mrf.mxu0
        %v1287 = vadd.f32 0.0, %v1286
        %v1288 = vpop.f32.mrf.mxu0
        %v1289 = vadd.f32 0.0, %v1288
        %1290 = vmatmul.bf16.gmra.mxu0 %v1142
        %v1291 = vpop.f32.mrf.mxu0
        %v1292 = vadd.f32 0.0, %v1291
        %v1293 = vpop.f32.mrf.mxu0
        %v1294 = vadd.f32 0.0, %v1293
        %1295 = vmatmul.bf16.gmra.mxu0 %v1144
        %v1296 = vpop.f32.mrf.mxu0
        %v1297 = vadd.f32 0.0, %v1296
        %v1298 = vpop.f32.mrf.mxu0
        %v1299 = vadd.f32 0.0, %v1298
        %1300 = vmatmul.bf16.gmra.mxu0 %v1146
        %v1301 = vpop.f32.mrf.mxu0
        %v1302 = vadd.f32 0.0, %v1301
        %v1303 = vpop.f32.mrf.mxu0
        %v1304 = vadd.f32 0.0, %v1303
        %1305 = vdwg.mxu0
        %1306 = vmatpush.bf16.msra.mxu0 %v1260
        %1307 = vmatpush.bf16.msra.mxu0 %v1259
        %1308 = vmatpush.bf16.msra.mxu0 %v1258
        %1309 = vmatpush.bf16.msra.mxu0 %v1257
        %1310 = vmatpush.bf16.msra.mxu0 %v1256
        %1311 = vmatpush.bf16.msra.mxu0 %v1255
        %1312 = vmatpush.bf16.msra.mxu0 %v1254
        %1313 = vmatpush.bf16.msra.mxu0 %v1253
        %1314 = vmatmul.bf16.gmra.mxu0 %v1141
        %v1315 = vpop.f32.mrf.mxu0
        %v1316 = vadd.f32 %v1287, %v1315
        %v1317 = vpop.f32.mrf.mxu0
        %v1318 = vadd.f32 %v1289, %v1317
        %1319 = vmatmul.bf16.gmra.mxu0 %v1143
        %v1320 = vpop.f32.mrf.mxu0
        %v1321 = vadd.f32 %v1292, %v1320
        %v1322 = vpop.f32.mrf.mxu0
        %v1323 = vadd.f32 %v1294, %v1322
        %1324 = vmatmul.bf16.gmra.mxu0 %v1145
        %v1325 = vpop.f32.mrf.mxu0
        %v1326 = vadd.f32 %v1297, %v1325
        %v1327 = vpop.f32.mrf.mxu0
        %v1328 = vadd.f32 %v1299, %v1327
        %1329 = vmatmul.bf16.gmra.mxu0 %v1147
        %v1330 = vpop.f32.mrf.mxu0
        %v1331 = vadd.f32 %v1302, %v1330
        %v1332 = vpop.f32.mrf.mxu0
        %v1333 = vadd.f32 %v1304, %v1332
        %1334 = vdwg.mxu0
        %v1335 = vadd.f32 %v1105, %v1316
        %v1336 = vadd.f32 %v1107, %v1318
        %v1337 = vadd.f32 %v1110, %v1321
        %v1338 = vadd.f32 %v1112, %v1323
        %v1339 = vadd.f32 %v1115, %v1326
        %v1340 = vadd.f32 %v1117, %v1328
        %v1341 = vadd.f32 %v1120, %v1331
        %v1342 = vadd.f32 %v1122, %v1333
        %s1343 = scalar_lea.vmem [#allocation2], 32
        %v1344 = vld [vmem:[%s1343] sm:$0xff]
        %v1345 = vld [vmem:[%s1343 + $0x10] sm:$0xff]
        %v1346 = vld [vmem:[%s1343 + $0x20] sm:$0xff]
        %v1347 = vld [vmem:[%s1343 + $0x30] sm:$0xff]
        %v1348 = vld [vmem:[%s1343 + $0x40] sm:$0xff]
        %v1349 = vld [vmem:[%s1343 + $0x50] sm:$0xff]
        %v1350 = vld [vmem:[%s1343 + $0x60] sm:$0xff]
        %v1351 = vld [vmem:[%s1343 + $0x70] sm:$0xff]
        %v1352 = vld [vmem:[%s1343 + $0x1] sm:$0xff]
        %v1353 = vld [vmem:[%s1343 + $0x11] sm:$0xff]
        %v1354 = vld [vmem:[%s1343 + $0x21] sm:$0xff]
        %v1355 = vld [vmem:[%s1343 + $0x31] sm:$0xff]
        %v1356 = vld [vmem:[%s1343 + $0x41] sm:$0xff]
        %v1357 = vld [vmem:[%s1343 + $0x51] sm:$0xff]
        %v1358 = vld [vmem:[%s1343 + $0x61] sm:$0xff]
        %v1359 = vld [vmem:[%s1343 + $0x71] sm:$0xff]
        %v1360 = vpack.c.bf16 %v1345, %v1344
        %v1361 = vpack.c.bf16 %v1353, %v1352
        %v1362 = vpack.c.bf16 %v1347, %v1346
        %v1363 = vpack.c.bf16 %v1355, %v1354
        %v1364 = vpack.c.bf16 %v1349, %v1348
        %v1365 = vpack.c.bf16 %v1357, %v1356
        %v1366 = vpack.c.bf16 %v1351, %v1350
        %v1367 = vpack.c.bf16 %v1359, %v1358
        %s1368 = scalar_lea.vmem %s3, 384
        %v1369 = vld [vmem:[%s1368] sm:$0xf]
        %v1370 = vld [vmem:[%s1368 + $0x4] sm:$0xf]
        %v1371 = vld [vmem:[%s1368 + $0x8] sm:$0xf]
        %v1372 = vld [vmem:[%s1368 + $0xc] sm:$0xf]
        %v1373 = vld [vmem:[%s1368 + $0x10] sm:$0xf]
        %v1374 = vld [vmem:[%s1368 + $0x14] sm:$0xf]
        %v1375 = vld [vmem:[%s1368 + $0x18] sm:$0xf]
        %v1376 = vld [vmem:[%s1368 + $0x1c] sm:$0xf]
        %v1377 = vld [vmem:[%s1368 + $0x20] sm:$0xf]
        %v1378 = vld [vmem:[%s1368 + $0x24] sm:$0xf]
        %v1379 = vld [vmem:[%s1368 + $0x28] sm:$0xf]
        %v1380 = vld [vmem:[%s1368 + $0x2c] sm:$0xf]
        %v1381 = vld [vmem:[%s1368 + $0x30] sm:$0xf]
        %v1382 = vld [vmem:[%s1368 + $0x34] sm:$0xf]
        %v1383 = vld [vmem:[%s1368 + $0x38] sm:$0xf]
        %v1384 = vld [vmem:[%s1368 + $0x3c] sm:$0xf]
        %v1385 = vld [vmem:[%s1368 + $0x40] sm:$0xf]
        %v1386 = vld [vmem:[%s1368 + $0x44] sm:$0xf]
        %v1387 = vld [vmem:[%s1368 + $0x48] sm:$0xf]
        %v1388 = vld [vmem:[%s1368 + $0x4c] sm:$0xf]
        %v1389 = vld [vmem:[%s1368 + $0x50] sm:$0xf]
        %v1390 = vld [vmem:[%s1368 + $0x54] sm:$0xf]
        %v1391 = vld [vmem:[%s1368 + $0x58] sm:$0xf]
        %v1392 = vld [vmem:[%s1368 + $0x5c] sm:$0xf]
        %v1393 = vld [vmem:[%s1368 + $0x60] sm:$0xf]
        %v1394 = vld [vmem:[%s1368 + $0x64] sm:$0xf]
        %v1395 = vld [vmem:[%s1368 + $0x68] sm:$0xf]
        %v1396 = vld [vmem:[%s1368 + $0x6c] sm:$0xf]
        %v1397 = vld [vmem:[%s1368 + $0x70] sm:$0xf]
        %v1398 = vld [vmem:[%s1368 + $0x74] sm:$0xf]
        %v1399 = vld [vmem:[%s1368 + $0x78] sm:$0xf]
        %v1400 = vld [vmem:[%s1368 + $0x7c] sm:$0xf]
        %v1433 = vunpack.c.l.b16 %v1369
        %v1434 = vunpack.c.l.b16 %v1370
        %v1435 = vunpack.c.l.b16 %v1371
        %v1436 = vunpack.c.l.b16 %v1372
        %v1437 = vunpack.c.l.b16 %v1373
        %v1438 = vunpack.c.l.b16 %v1374
        %v1439 = vunpack.c.l.b16 %v1375
        %v1440 = vunpack.c.l.b16 %v1376
        %v1441 = vunpack.c.l.b16 %v1377
        %v1442 = vunpack.c.l.b16 %v1378
        %v1443 = vunpack.c.l.b16 %v1379
        %v1444 = vunpack.c.l.b16 %v1380
        %v1445 = vunpack.c.l.b16 %v1381
        %v1446 = vunpack.c.l.b16 %v1382
        %v1447 = vunpack.c.l.b16 %v1383
        %v1448 = vunpack.c.l.b16 %v1384
        %v1449 = vunpack.c.l.b16 %v1385
        %v1450 = vunpack.c.l.b16 %v1386
        %v1451 = vunpack.c.l.b16 %v1387
        %v1452 = vunpack.c.l.b16 %v1388
        %v1453 = vunpack.c.l.b16 %v1389
        %v1454 = vunpack.c.l.b16 %v1390
        %v1455 = vunpack.c.l.b16 %v1391
        %v1456 = vunpack.c.l.b16 %v1392
        %v1457 = vunpack.c.l.b16 %v1393
        %v1458 = vunpack.c.l.b16 %v1394
        %v1459 = vunpack.c.l.b16 %v1395
        %v1460 = vunpack.c.l.b16 %v1396
        %v1461 = vunpack.c.l.b16 %v1397
        %v1462 = vunpack.c.l.b16 %v1398
        %v1463 = vunpack.c.l.b16 %v1399
        %v1464 = vunpack.c.l.b16 %v1400
        %v1465 = vpack.c.b16 %v1434, %v1433
        %v1466 = vpack.c.b16 %v1436, %v1435
        %v1467 = vpack.c.b16 %v1438, %v1437
        %v1468 = vpack.c.b16 %v1440, %v1439
        %v1469 = vpack.c.b16 %v1442, %v1441
        %v1470 = vpack.c.b16 %v1444, %v1443
        %v1471 = vpack.c.b16 %v1446, %v1445
        %v1472 = vpack.c.b16 %v1448, %v1447
        %v1473 = vpack.c.b16 %v1450, %v1449
        %v1474 = vpack.c.b16 %v1452, %v1451
        %v1475 = vpack.c.b16 %v1454, %v1453
        %v1476 = vpack.c.b16 %v1456, %v1455
        %v1477 = vpack.c.b16 %v1458, %v1457
        %v1478 = vpack.c.b16 %v1460, %v1459
        %v1479 = vpack.c.b16 %v1462, %v1461
        %v1480 = vpack.c.b16 %v1464, %v1463
        %1497 = vmatpush.bf16.msra.mxu0 %v1472
        %1498 = vmatpush.bf16.msra.mxu0 %v1471
        %1499 = vmatpush.bf16.msra.mxu0 %v1470
        %1500 = vmatpush.bf16.msra.mxu0 %v1469
        %1501 = vmatpush.bf16.msra.mxu0 %v1468
        %1502 = vmatpush.bf16.msra.mxu0 %v1467
        %1503 = vmatpush.bf16.msra.mxu0 %v1466
        %1504 = vmatpush.bf16.msra.mxu0 %v1465
        %1505 = vmatmul.bf16.gmra.mxu0 %v1360
        %v1506 = vpop.f32.mrf.mxu0
        %v1507 = vadd.f32 0.0, %v1506
        %v1508 = vpop.f32.mrf.mxu0
        %v1509 = vadd.f32 0.0, %v1508
        %1510 = vmatmul.bf16.gmra.mxu0 %v1362
        %v1511 = vpop.f32.mrf.mxu0
        %v1512 = vadd.f32 0.0, %v1511
        %v1513 = vpop.f32.mrf.mxu0
        %v1514 = vadd.f32 0.0, %v1513
        %1515 = vmatmul.bf16.gmra.mxu0 %v1364
        %v1516 = vpop.f32.mrf.mxu0
        %v1517 = vadd.f32 0.0, %v1516
        %v1518 = vpop.f32.mrf.mxu0
        %v1519 = vadd.f32 0.0, %v1518
        %1520 = vmatmul.bf16.gmra.mxu0 %v1366
        %v1521 = vpop.f32.mrf.mxu0
        %v1522 = vadd.f32 0.0, %v1521
        %v1523 = vpop.f32.mrf.mxu0
        %v1524 = vadd.f32 0.0, %v1523
        %1525 = vdwg.mxu0
        %1526 = vmatpush.bf16.msra.mxu0 %v1480
        %1527 = vmatpush.bf16.msra.mxu0 %v1479
        %1528 = vmatpush.bf16.msra.mxu0 %v1478
        %1529 = vmatpush.bf16.msra.mxu0 %v1477
        %1530 = vmatpush.bf16.msra.mxu0 %v1476
        %1531 = vmatpush.bf16.msra.mxu0 %v1475
        %1532 = vmatpush.bf16.msra.mxu0 %v1474
        %1533 = vmatpush.bf16.msra.mxu0 %v1473
        %1534 = vmatmul.bf16.gmra.mxu0 %v1361
        %v1535 = vpop.f32.mrf.mxu0
        %v1536 = vadd.f32 %v1507, %v1535
        %v1537 = vpop.f32.mrf.mxu0
        %v1538 = vadd.f32 %v1509, %v1537
        %1539 = vmatmul.bf16.gmra.mxu0 %v1363
        %v1540 = vpop.f32.mrf.mxu0
        %v1541 = vadd.f32 %v1512, %v1540
        %v1542 = vpop.f32.mrf.mxu0
        %v1543 = vadd.f32 %v1514, %v1542
        %1544 = vmatmul.bf16.gmra.mxu0 %v1365
        %v1545 = vpop.f32.mrf.mxu0
        %v1546 = vadd.f32 %v1517, %v1545
        %v1547 = vpop.f32.mrf.mxu0
        %v1548 = vadd.f32 %v1519, %v1547
        %1549 = vmatmul.bf16.gmra.mxu0 %v1367
        %v1550 = vpop.f32.mrf.mxu0
        %v1551 = vadd.f32 %v1522, %v1550
        %v1552 = vpop.f32.mrf.mxu0
        %v1553 = vadd.f32 %v1524, %v1552
        %1554 = vdwg.mxu0
        %v1555 = vadd.f32 %v1335, %v1536
        %v1556 = vadd.f32 %v1336, %v1538
        %v1557 = vadd.f32 %v1337, %v1541
        %v1558 = vadd.f32 %v1338, %v1543
        %v1559 = vadd.f32 %v1339, %v1546
        %v1560 = vadd.f32 %v1340, %v1548
        %v1561 = vadd.f32 %v1341, %v1551
        %v1562 = vadd.f32 %v1342, %v1553
        %v1563 = vld [vmem:[%s1343 + $0x2] sm:$0xff]
        %v1564 = vld [vmem:[%s1343 + $0x12] sm:$0xff]
        %v1565 = vld [vmem:[%s1343 + $0x22] sm:$0xff]
        %v1566 = vld [vmem:[%s1343 + $0x32] sm:$0xff]
        %v1567 = vld [vmem:[%s1343 + $0x42] sm:$0xff]
        %v1568 = vld [vmem:[%s1343 + $0x52] sm:$0xff]
        %v1569 = vld [vmem:[%s1343 + $0x62] sm:$0xff]
        %v1570 = vld [vmem:[%s1343 + $0x72] sm:$0xff]
        %v1571 = vpack.c.bf16 %v1564, %v1563
        %v1572 = vpack.c.bf16 %v1566, %v1565
        %v1573 = vpack.c.bf16 %v1568, %v1567
        %v1574 = vpack.c.bf16 %v1570, %v1569
        %v1575 = vld [vmem:[%s4] sm:$0xf]
        %v1576 = vld [vmem:[%s4 + $0x4] sm:$0xf]
        %v1577 = vld [vmem:[%s4 + $0x8] sm:$0xf]
        %v1578 = vld [vmem:[%s4 + $0xc] sm:$0xf]
        %v1579 = vld [vmem:[%s4 + $0x10] sm:$0xf]
        %v1580 = vld [vmem:[%s4 + $0x14] sm:$0xf]
        %v1581 = vld [vmem:[%s4 + $0x18] sm:$0xf]
        %v1582 = vld [vmem:[%s4 + $0x1c] sm:$0xf]
        %v1583 = vld [vmem:[%s4 + $0x20] sm:$0xf]
        %v1584 = vld [vmem:[%s4 + $0x24] sm:$0xf]
        %v1585 = vld [vmem:[%s4 + $0x28] sm:$0xf]
        %v1586 = vld [vmem:[%s4 + $0x2c] sm:$0xf]
        %v1587 = vld [vmem:[%s4 + $0x30] sm:$0xf]
        %v1588 = vld [vmem:[%s4 + $0x34] sm:$0xf]
        %v1589 = vld [vmem:[%s4 + $0x38] sm:$0xf]
        %v1590 = vld [vmem:[%s4 + $0x3c] sm:$0xf]
        %v1607 = vunpack.c.l.b16 %v1575
        %v1608 = vunpack.c.l.b16 %v1576
        %v1609 = vunpack.c.l.b16 %v1577
        %v1610 = vunpack.c.l.b16 %v1578
        %v1611 = vunpack.c.l.b16 %v1579
        %v1612 = vunpack.c.l.b16 %v1580
        %v1613 = vunpack.c.l.b16 %v1581
        %v1614 = vunpack.c.l.b16 %v1582
        %v1615 = vunpack.c.l.b16 %v1583
        %v1616 = vunpack.c.l.b16 %v1584
        %v1617 = vunpack.c.l.b16 %v1585
        %v1618 = vunpack.c.l.b16 %v1586
        %v1619 = vunpack.c.l.b16 %v1587
        %v1620 = vunpack.c.l.b16 %v1588
        %v1621 = vunpack.c.l.b16 %v1589
        %v1622 = vunpack.c.l.b16 %v1590
        %v1623 = vpack.c.b16 %v1608, %v1607
        %v1624 = vpack.c.b16 %v1610, %v1609
        %v1625 = vpack.c.b16 %v1612, %v1611
        %v1626 = vpack.c.b16 %v1614, %v1613
        %v1627 = vpack.c.b16 %v1616, %v1615
        %v1628 = vpack.c.b16 %v1618, %v1617
        %v1629 = vpack.c.b16 %v1620, %v1619
        %v1630 = vpack.c.b16 %v1622, %v1621
        %1639 = vmatpush.bf16.msra.mxu0 %v1630
        %1640 = vmatpush.bf16.msra.mxu0 %v1629
        %1641 = vmatpush.bf16.msra.mxu0 %v1628
        %1642 = vmatpush.bf16.msra.mxu0 %v1627
        %1643 = vmatpush.bf16.msra.mxu0 %v1626
        %1644 = vmatpush.bf16.msra.mxu0 %v1625
        %1645 = vmatpush.bf16.msra.mxu0 %v1624
        %1646 = vmatpush.bf16.msra.mxu0 %v1623
        %1647 = vmatmul.bf16.gmra.mxu0 %v1571
        %v1648 = vpop.f32.mrf.mxu0
        %v1649 = vadd.f32 0.0, %v1648
        %v1650 = vpop.f32.mrf.mxu0
        %v1651 = vadd.f32 0.0, %v1650
        %1652 = vmatmul.bf16.gmra.mxu0 %v1572
        %v1653 = vpop.f32.mrf.mxu0
        %v1654 = vadd.f32 0.0, %v1653
        %v1655 = vpop.f32.mrf.mxu0
        %v1656 = vadd.f32 0.0, %v1655
        %1657 = vmatmul.bf16.gmra.mxu0 %v1573
        %v1658 = vpop.f32.mrf.mxu0
        %v1659 = vadd.f32 0.0, %v1658
        %v1660 = vpop.f32.mrf.mxu0
        %v1661 = vadd.f32 0.0, %v1660
        %1662 = vmatmul.bf16.gmra.mxu0 %v1574
        %v1663 = vpop.f32.mrf.mxu0
        %v1664 = vadd.f32 0.0, %v1663
        %v1665 = vpop.f32.mrf.mxu0
        %v1666 = vadd.f32 0.0, %v1665
        %1667 = vdwg.mxu0
        %v1668 = vadd.f32 %v1555, %v1649
        %v1669 = vadd.f32 %v1556, %v1651
        %v1670 = vadd.f32 %v1557, %v1654
        %v1671 = vadd.f32 %v1558, %v1656
        %v1672 = vadd.f32 %v1559, %v1659
        %v1673 = vadd.f32 %v1560, %v1661
        %v1674 = vadd.f32 %v1561, %v1664
        %v1675 = vadd.f32 %v1562, %v1666
        %v1676 = vld [vmem:[%s5] sm:$0x1]
        %v1678 = vperm.slane %v1676, 0
        %v1680 = vadd.f32 %v1668, %v1678
        %v1681 = vadd.f32 %v1669, %v1678
        %v1682 = vadd.f32 %v1670, %v1678
        %v1683 = vadd.f32 %v1671, %v1678
        %v1684 = vadd.f32 %v1672, %v1678
        %v1685 = vadd.f32 %v1673, %v1678
        %v1686 = vadd.f32 %v1674, %v1678
        %v1687 = vadd.f32 %v1675, %v1678
        %v1688 = vmax.f32 %v1680, 0.0
        %v1689 = vmax.f32 %v1681, 0.0
        %v1690 = vmax.f32 %v1682, 0.0
        %v1691 = vmax.f32 %v1683, 0.0
        %v1692 = vmax.f32 %v1684, 0.0
        %v1693 = vmax.f32 %v1685, 0.0
        %v1694 = vmax.f32 %v1686, 0.0
        %v1695 = vmax.f32 %v1687, 0.0
        %v1696 = vpack.c.bf16 %v1688, %v1688
        %v1697 = vpack.c.bf16 %v1689, %v1689
        %v1698 = vpack.c.bf16 %v1690, %v1690
        %v1699 = vpack.c.bf16 %v1691, %v1691
        %v1700 = vpack.c.bf16 %v1692, %v1692
        %v1701 = vpack.c.bf16 %v1693, %v1693
        %v1702 = vpack.c.bf16 %v1694, %v1694
        %v1703 = vpack.c.bf16 %v1695, %v1695
        %1704 = vst [vmem:[%s384] sm:$0xf] %v1696
        %1705 = vst [vmem:[%s384 + $0x4] sm:$0xf] %v1697
        %1706 = vst [vmem:[%s384 + $0x8] sm:$0xf] %v1698
        %1707 = vst [vmem:[%s384 + $0xc] sm:$0xf] %v1699
        %1708 = vst [vmem:[%s384 + $0x10] sm:$0xf] %v1700
        %1709 = vst [vmem:[%s384 + $0x14] sm:$0xf] %v1701
        %1710 = vst [vmem:[%s384 + $0x18] sm:$0xf] %v1702
        %1711 = vst [vmem:[%s384 + $0x1c] sm:$0xf] %v1703
        %s1712 = scalar_lea.vmem [#allocation3], 16
        %1713 = vst [vmem:[%s1712 + $0x1] sm:$0xff] %v1688
        %1714 = vst [vmem:[%s1712 + $0x11] sm:$0xff] %v1689
        %1715 = vst [vmem:[%s1712 + $0x21] sm:$0xff] %v1690
        %1716 = vst [vmem:[%s1712 + $0x31] sm:$0xff] %v1691
        %1717 = vst [vmem:[%s1712 + $0x41] sm:$0xff] %v1692
        %1718 = vst [vmem:[%s1712 + $0x51] sm:$0xff] %v1693
        %1719 = vst [vmem:[%s1712 + $0x61] sm:$0xff] %v1694
        %1720 = vst [vmem:[%s1712 + $0x71] sm:$0xff] %v1695
        %v1721 = vld [vmem:[%s6] sm:$0xff]
        %v1722 = vld [vmem:[%s6 + $0x8] sm:$0x1]
        %v1723 = vld [vmem:[#allocation3] sm:$0xff]
        %v1724 = vld [vmem:[#allocation3 + $0x10] sm:$0xff]
        %v1725 = vld [vmem:[#allocation3 + $0x20] sm:$0xff]
        %v1726 = vld [vmem:[#allocation3 + $0x30] sm:$0xff]
        %v1727 = vld [vmem:[#allocation3 + $0x40] sm:$0xff]
        %v1728 = vld [vmem:[#allocation3 + $0x50] sm:$0xff]
        %v1729 = vld [vmem:[#allocation3 + $0x60] sm:$0xff]
        %v1730 = vld [vmem:[#allocation3 + $0x70] sm:$0xff]
        %v1731 = vperm.slane %v1721, 0
        %v1732 = vmul.f32 %v1723, %v1731
        %v1733 = vmul.f32 %v1724, %v1731
        %v1734 = vmul.f32 %v1725, %v1731
        %v1735 = vmul.f32 %v1726, %v1731
        %v1736 = vmul.f32 %v1727, %v1731
        %v1737 = vmul.f32 %v1728, %v1731
        %v1738 = vmul.f32 %v1729, %v1731
        %v1739 = vmul.f32 %v1730, %v1731
        %1740 = vadd.xlane.f32.xlu0 %v1732
        %v1741 = vpop.xlane.xlu0 %1740
        %1742 = vadd.xlane.f32.xlu0 %v1733
        %v1743 = vpop.xlane.xlu0 %1742
        %1744 = vadd.xlane.f32.xlu0 %v1734
        %v1745 = vpop.xlane.xlu0 %1744
        %1746 = vadd.xlane.f32.xlu0 %v1735
        %v1747 = vpop.xlane.xlu0 %1746
        %1748 = vadd.xlane.f32.xlu0 %v1736
        %v1749 = vpop.xlane.xlu0 %1748
        %1750 = vadd.xlane.f32.xlu0 %v1737
        %v1751 = vpop.xlane.xlu0 %1750
        %1752 = vadd.xlane.f32.xlu0 %v1738
        %v1753 = vpop.xlane.xlu0 %1752
        %1754 = vadd.xlane.f32.xlu0 %v1739
        %v1755 = vpop.xlane.xlu0 %1754
        %v1756 = vadd.f32 %v1741, 0.0
        %v1757 = vadd.f32 %v1743, 0.0
        %v1758 = vadd.f32 %v1745, 0.0
        %v1759 = vadd.f32 %v1747, 0.0
        %v1760 = vadd.f32 %v1749, 0.0
        %v1761 = vadd.f32 %v1751, 0.0
        %v1762 = vadd.f32 %v1753, 0.0
        %v1763 = vadd.f32 %v1755, 0.0
        %v1764 = vld [vmem:[#allocation3 + $0x1] sm:$0xff]
        %v1765 = vld [vmem:[#allocation3 + $0x11] sm:$0xff]
        %v1766 = vld [vmem:[#allocation3 + $0x21] sm:$0xff]
        %v1767 = vld [vmem:[#allocation3 + $0x31] sm:$0xff]
        %v1768 = vld [vmem:[#allocation3 + $0x41] sm:$0xff]
        %v1769 = vld [vmem:[#allocation3 + $0x51] sm:$0xff]
        %v1770 = vld [vmem:[#allocation3 + $0x61] sm:$0xff]
        %v1771 = vld [vmem:[#allocation3 + $0x71] sm:$0xff]
        %v1772 = vperm.slane %v1721, 1
        %v1773 = vmul.f32 %v1764, %v1772
        %v1774 = vmul.f32 %v1765, %v1772
        %v1775 = vmul.f32 %v1766, %v1772
        %v1776 = vmul.f32 %v1767, %v1772
        %v1777 = vmul.f32 %v1768, %v1772
        %v1778 = vmul.f32 %v1769, %v1772
        %v1779 = vmul.f32 %v1770, %v1772
        %v1780 = vmul.f32 %v1771, %v1772
        %1781 = vadd.xlane.f32.xlu0 %v1773
        %v1782 = vpop.xlane.xlu0 %1781
        %1783 = vadd.xlane.f32.xlu0 %v1774
        %v1784 = vpop.xlane.xlu0 %1783
        %1785 = vadd.xlane.f32.xlu0 %v1775
        %v1786 = vpop.xlane.xlu0 %1785
        %1787 = vadd.xlane.f32.xlu0 %v1776
        %v1788 = vpop.xlane.xlu0 %1787
        %1789 = vadd.xlane.f32.xlu0 %v1777
        %v1790 = vpop.xlane.xlu0 %1789
        %1791 = vadd.xlane.f32.xlu0 %v1778
        %v1792 = vpop.xlane.xlu0 %1791
        %1793 = vadd.xlane.f32.xlu0 %v1779
        %v1794 = vpop.xlane.xlu0 %1793
        %1795 = vadd.xlane.f32.xlu0 %v1780
        %v1796 = vpop.xlane.xlu0 %1795
        %v1797 = vadd.f32 %v1756, %v1782
        %v1798 = vadd.f32 %v1757, %v1784
        %v1799 = vadd.f32 %v1758, %v1786
        %v1800 = vadd.f32 %v1759, %v1788
        %v1801 = vadd.f32 %v1760, %v1790
        %v1802 = vadd.f32 %v1761, %v1792
        %v1803 = vadd.f32 %v1762, %v1794
        %v1804 = vadd.f32 %v1763, %v1796
        %v1805 = vld [vmem:[#allocation3 + $0x2] sm:$0xff]
        %v1806 = vld [vmem:[#allocation3 + $0x12] sm:$0xff]
        %v1807 = vld [vmem:[#allocation3 + $0x22] sm:$0xff]
        %v1808 = vld [vmem:[#allocation3 + $0x32] sm:$0xff]
        %v1809 = vld [vmem:[#allocation3 + $0x42] sm:$0xff]
        %v1810 = vld [vmem:[#allocation3 + $0x52] sm:$0xff]
        %v1811 = vld [vmem:[#allocation3 + $0x62] sm:$0xff]
        %v1812 = vld [vmem:[#allocation3 + $0x72] sm:$0xff]
        %v1813 = vperm.slane %v1721, 2
        %v1814 = vmul.f32 %v1805, %v1813
        %v1815 = vmul.f32 %v1806, %v1813
        %v1816 = vmul.f32 %v1807, %v1813
        %v1817 = vmul.f32 %v1808, %v1813
        %v1818 = vmul.f32 %v1809, %v1813
        %v1819 = vmul.f32 %v1810, %v1813
        %v1820 = vmul.f32 %v1811, %v1813
        %v1821 = vmul.f32 %v1812, %v1813
        %1822 = vadd.xlane.f32.xlu0 %v1814
        %v1823 = vpop.xlane.xlu0 %1822
        %1824 = vadd.xlane.f32.xlu0 %v1815
        %v1825 = vpop.xlane.xlu0 %1824
        %1826 = vadd.xlane.f32.xlu0 %v1816
        %v1827 = vpop.xlane.xlu0 %1826
        %1828 = vadd.xlane.f32.xlu0 %v1817
        %v1829 = vpop.xlane.xlu0 %1828
        %1830 = vadd.xlane.f32.xlu0 %v1818
        %v1831 = vpop.xlane.xlu0 %1830
        %1832 = vadd.xlane.f32.xlu0 %v1819
        %v1833 = vpop.xlane.xlu0 %1832
        %1834 = vadd.xlane.f32.xlu0 %v1820
        %v1835 = vpop.xlane.xlu0 %1834
        %1836 = vadd.xlane.f32.xlu0 %v1821
        %v1837 = vpop.xlane.xlu0 %1836
        %v1838 = vadd.f32 %v1797, %v1823
        %v1839 = vadd.f32 %v1798, %v1825
        %v1840 = vadd.f32 %v1799, %v1827
        %v1841 = vadd.f32 %v1800, %v1829
        %v1842 = vadd.f32 %v1801, %v1831
        %v1843 = vadd.f32 %v1802, %v1833
        %v1844 = vadd.f32 %v1803, %v1835
        %v1845 = vadd.f32 %v1804, %v1837
        %v1846 = vld [vmem:[%s1712] sm:$0xff]
        %v1847 = vld [vmem:[%s1712 + $0x10] sm:$0xff]
        %v1848 = vld [vmem:[%s1712 + $0x20] sm:$0xff]
        %v1849 = vld [vmem:[%s1712 + $0x30] sm:$0xff]
        %v1850 = vld [vmem:[%s1712 + $0x40] sm:$0xff]
        %v1851 = vld [vmem:[%s1712 + $0x50] sm:$0xff]
        %v1852 = vld [vmem:[%s1712 + $0x60] sm:$0xff]
        %v1853 = vld [vmem:[%s1712 + $0x70] sm:$0xff]
        %v1854 = vperm.slane %v1721, 3
        %v1855 = vmul.f32 %v1846, %v1854
        %v1856 = vmul.f32 %v1847, %v1854
        %v1857 = vmul.f32 %v1848, %v1854
        %v1858 = vmul.f32 %v1849, %v1854
        %v1859 = vmul.f32 %v1850, %v1854
        %v1860 = vmul.f32 %v1851, %v1854
        %v1861 = vmul.f32 %v1852, %v1854
        %v1862 = vmul.f32 %v1853, %v1854
        %1863 = vadd.xlane.f32.xlu0 %v1855
        %v1864 = vpop.xlane.xlu0 %1863
        %1865 = vadd.xlane.f32.xlu0 %v1856
        %v1866 = vpop.xlane.xlu0 %1865
        %1867 = vadd.xlane.f32.xlu0 %v1857
        %v1868 = vpop.xlane.xlu0 %1867
        %1869 = vadd.xlane.f32.xlu0 %v1858
        %v1870 = vpop.xlane.xlu0 %1869
        %1871 = vadd.xlane.f32.xlu0 %v1859
        %v1872 = vpop.xlane.xlu0 %1871
        %1873 = vadd.xlane.f32.xlu0 %v1860
        %v1874 = vpop.xlane.xlu0 %1873
        %1875 = vadd.xlane.f32.xlu0 %v1861
        %v1876 = vpop.xlane.xlu0 %1875
        %1877 = vadd.xlane.f32.xlu0 %v1862
        %v1878 = vpop.xlane.xlu0 %1877
        %v1879 = vadd.f32 %v1838, %v1864
        %v1880 = vadd.f32 %v1839, %v1866
        %v1881 = vadd.f32 %v1840, %v1868
        %v1882 = vadd.f32 %v1841, %v1870
        %v1883 = vadd.f32 %v1842, %v1872
        %v1884 = vadd.f32 %v1843, %v1874
        %v1885 = vadd.f32 %v1844, %v1876
        %v1886 = vadd.f32 %v1845, %v1878
        %v1887 = vld [vmem:[%s1712 + $0x1] sm:$0xff]
        %v1888 = vld [vmem:[%s1712 + $0x11] sm:$0xff]
        %v1889 = vld [vmem:[%s1712 + $0x21] sm:$0xff]
        %v1890 = vld [vmem:[%s1712 + $0x31] sm:$0xff]
        %v1891 = vld [vmem:[%s1712 + $0x41] sm:$0xff]
        %v1892 = vld [vmem:[%s1712 + $0x51] sm:$0xff]
        %v1893 = vld [vmem:[%s1712 + $0x61] sm:$0xff]
        %v1894 = vld [vmem:[%s1712 + $0x71] sm:$0xff]
        %v1895 = vperm.slane %v1721, 4
        %v1896 = vmul.f32 %v1887, %v1895
        %v1897 = vmul.f32 %v1888, %v1895
        %v1898 = vmul.f32 %v1889, %v1895
        %v1899 = vmul.f32 %v1890, %v1895
        %v1900 = vmul.f32 %v1891, %v1895
        %v1901 = vmul.f32 %v1892, %v1895
        %v1902 = vmul.f32 %v1893, %v1895
        %v1903 = vmul.f32 %v1894, %v1895
        %1904 = vadd.xlane.f32.xlu0 %v1896
        %v1905 = vpop.xlane.xlu0 %1904
        %1906 = vadd.xlane.f32.xlu0 %v1897
        %v1907 = vpop.xlane.xlu0 %1906
        %1908 = vadd.xlane.f32.xlu0 %v1898
        %v1909 = vpop.xlane.xlu0 %1908
        %1910 = vadd.xlane.f32.xlu0 %v1899
        %v1911 = vpop.xlane.xlu0 %1910
        %1912 = vadd.xlane.f32.xlu0 %v1900
        %v1913 = vpop.xlane.xlu0 %1912
        %1914 = vadd.xlane.f32.xlu0 %v1901
        %v1915 = vpop.xlane.xlu0 %1914
        %1916 = vadd.xlane.f32.xlu0 %v1902
        %v1917 = vpop.xlane.xlu0 %1916
        %1918 = vadd.xlane.f32.xlu0 %v1903
        %v1919 = vpop.xlane.xlu0 %1918
        %v1920 = vadd.f32 %v1879, %v1905
        %v1921 = vadd.f32 %v1880, %v1907
        %v1922 = vadd.f32 %v1881, %v1909
        %v1923 = vadd.f32 %v1882, %v1911
        %v1924 = vadd.f32 %v1883, %v1913
        %v1925 = vadd.f32 %v1884, %v1915
        %v1926 = vadd.f32 %v1885, %v1917
        %v1927 = vadd.f32 %v1886, %v1919
        %v1928 = vld [vmem:[%s1712 + $0x2] sm:$0xff]
        %v1929 = vld [vmem:[%s1712 + $0x12] sm:$0xff]
        %v1930 = vld [vmem:[%s1712 + $0x22] sm:$0xff]
        %v1931 = vld [vmem:[%s1712 + $0x32] sm:$0xff]
        %v1932 = vld [vmem:[%s1712 + $0x42] sm:$0xff]
        %v1933 = vld [vmem:[%s1712 + $0x52] sm:$0xff]
        %v1934 = vld [vmem:[%s1712 + $0x62] sm:$0xff]
        %v1935 = vld [vmem:[%s1712 + $0x72] sm:$0xff]
        %v1936 = vperm.slane %v1721, 5
        %v1937 = vmul.f32 %v1928, %v1936
        %v1938 = vmul.f32 %v1929, %v1936
        %v1939 = vmul.f32 %v1930, %v1936
        %v1940 = vmul.f32 %v1931, %v1936
        %v1941 = vmul.f32 %v1932, %v1936
        %v1942 = vmul.f32 %v1933, %v1936
        %v1943 = vmul.f32 %v1934, %v1936
        %v1944 = vmul.f32 %v1935, %v1936
        %1945 = vadd.xlane.f32.xlu0 %v1937
        %v1946 = vpop.xlane.xlu0 %1945
        %1947 = vadd.xlane.f32.xlu0 %v1938
        %v1948 = vpop.xlane.xlu0 %1947
        %1949 = vadd.xlane.f32.xlu0 %v1939
        %v1950 = vpop.xlane.xlu0 %1949
        %1951 = vadd.xlane.f32.xlu0 %v1940
        %v1952 = vpop.xlane.xlu0 %1951
        %1953 = vadd.xlane.f32.xlu0 %v1941
        %v1954 = vpop.xlane.xlu0 %1953
        %1955 = vadd.xlane.f32.xlu0 %v1942
        %v1956 = vpop.xlane.xlu0 %1955
        %1957 = vadd.xlane.f32.xlu0 %v1943
        %v1958 = vpop.xlane.xlu0 %1957
        %1959 = vadd.xlane.f32.xlu0 %v1944
        %v1960 = vpop.xlane.xlu0 %1959
        %v1961 = vadd.f32 %v1920, %v1946
        %v1962 = vadd.f32 %v1921, %v1948
        %v1963 = vadd.f32 %v1922, %v1950
        %v1964 = vadd.f32 %v1923, %v1952
        %v1965 = vadd.f32 %v1924, %v1954
        %v1966 = vadd.f32 %v1925, %v1956
        %v1967 = vadd.f32 %v1926, %v1958
        %v1968 = vadd.f32 %v1927, %v1960
        %s1969 = scalar_lea.vmem [#allocation3], 32
        %v1970 = vld [vmem:[%s1969] sm:$0xff]
        %v1971 = vld [vmem:[%s1969 + $0x10] sm:$0xff]
        %v1972 = vld [vmem:[%s1969 + $0x20] sm:$0xff]
        %v1973 = vld [vmem:[%s1969 + $0x30] sm:$0xff]
        %v1974 = vld [vmem:[%s1969 + $0x40] sm:$0xff]
        %v1975 = vld [vmem:[%s1969 + $0x50] sm:$0xff]
        %v1976 = vld [vmem:[%s1969 + $0x60] sm:$0xff]
        %v1977 = vld [vmem:[%s1969 + $0x70] sm:$0xff]
        %v1978 = vperm.slane %v1721, 6
        %v1979 = vmul.f32 %v1970, %v1978
        %v1980 = vmul.f32 %v1971, %v1978
        %v1981 = vmul.f32 %v1972, %v1978
        %v1982 = vmul.f32 %v1973, %v1978
        %v1983 = vmul.f32 %v1974, %v1978
        %v1984 = vmul.f32 %v1975, %v1978
        %v1985 = vmul.f32 %v1976, %v1978
        %v1986 = vmul.f32 %v1977, %v1978
        %1987 = vadd.xlane.f32.xlu0 %v1979
        %v1988 = vpop.xlane.xlu0 %1987
        %1989 = vadd.xlane.f32.xlu0 %v1980
        %v1990 = vpop.xlane.xlu0 %1989
        %1991 = vadd.xlane.f32.xlu0 %v1981
        %v1992 = vpop.xlane.xlu0 %1991
        %1993 = vadd.xlane.f32.xlu0 %v1982
        %v1994 = vpop.xlane.xlu0 %1993
        %1995 = vadd.xlane.f32.xlu0 %v1983
        %v1996 = vpop.xlane.xlu0 %1995
        %1997 = vadd.xlane.f32.xlu0 %v1984
        %v1998 = vpop.xlane.xlu0 %1997
        %1999 = vadd.xlane.f32.xlu0 %v1985
        %v2000 = vpop.xlane.xlu0 %1999
        %2001 = vadd.xlane.f32.xlu0 %v1986
        %v2002 = vpop.xlane.xlu0 %2001
        %v2003 = vadd.f32 %v1961, %v1988
        %v2004 = vadd.f32 %v1962, %v1990
        %v2005 = vadd.f32 %v1963, %v1992
        %v2006 = vadd.f32 %v1964, %v1994
        %v2007 = vadd.f32 %v1965, %v1996
        %v2008 = vadd.f32 %v1966, %v1998
        %v2009 = vadd.f32 %v1967, %v2000
        %v2010 = vadd.f32 %v1968, %v2002
        %v2011 = vld [vmem:[%s1969 + $0x1] sm:$0xff]
        %v2012 = vld [vmem:[%s1969 + $0x11] sm:$0xff]
        %v2013 = vld [vmem:[%s1969 + $0x21] sm:$0xff]
        %v2014 = vld [vmem:[%s1969 + $0x31] sm:$0xff]
        %v2015 = vld [vmem:[%s1969 + $0x41] sm:$0xff]
        %v2016 = vld [vmem:[%s1969 + $0x51] sm:$0xff]
        %v2017 = vld [vmem:[%s1969 + $0x61] sm:$0xff]
        %v2018 = vld [vmem:[%s1969 + $0x71] sm:$0xff]
        %v2019 = vperm.slane %v1721, 7
        %v2020 = vmul.f32 %v2011, %v2019
        %v2021 = vmul.f32 %v2012, %v2019
        %v2022 = vmul.f32 %v2013, %v2019
        %v2023 = vmul.f32 %v2014, %v2019
        %v2024 = vmul.f32 %v2015, %v2019
        %v2025 = vmul.f32 %v2016, %v2019
        %v2026 = vmul.f32 %v2017, %v2019
        %v2027 = vmul.f32 %v2018, %v2019
        %2028 = vadd.xlane.f32.xlu0 %v2020
        %v2029 = vpop.xlane.xlu0 %2028
        %2030 = vadd.xlane.f32.xlu0 %v2021
        %v2031 = vpop.xlane.xlu0 %2030
        %2032 = vadd.xlane.f32.xlu0 %v2022
        %v2033 = vpop.xlane.xlu0 %2032
        %2034 = vadd.xlane.f32.xlu0 %v2023
        %v2035 = vpop.xlane.xlu0 %2034
        %2036 = vadd.xlane.f32.xlu0 %v2024
        %v2037 = vpop.xlane.xlu0 %2036
        %2038 = vadd.xlane.f32.xlu0 %v2025
        %v2039 = vpop.xlane.xlu0 %2038
        %2040 = vadd.xlane.f32.xlu0 %v2026
        %v2041 = vpop.xlane.xlu0 %2040
        %2042 = vadd.xlane.f32.xlu0 %v2027
        %v2043 = vpop.xlane.xlu0 %2042
        %v2044 = vadd.f32 %v2003, %v2029
        %v2045 = vadd.f32 %v2004, %v2031
        %v2046 = vadd.f32 %v2005, %v2033
        %v2047 = vadd.f32 %v2006, %v2035
        %v2048 = vadd.f32 %v2007, %v2037
        %v2049 = vadd.f32 %v2008, %v2039
        %v2050 = vadd.f32 %v2009, %v2041
        %v2051 = vadd.f32 %v2010, %v2043
        %v2052 = vld [vmem:[%s1969 + $0x2] sm:$0xff]
        %v2053 = vld [vmem:[%s1969 + $0x12] sm:$0xff]
        %v2054 = vld [vmem:[%s1969 + $0x22] sm:$0xff]
        %v2055 = vld [vmem:[%s1969 + $0x32] sm:$0xff]
        %v2056 = vld [vmem:[%s1969 + $0x42] sm:$0xff]
        %v2057 = vld [vmem:[%s1969 + $0x52] sm:$0xff]
        %v2058 = vld [vmem:[%s1969 + $0x62] sm:$0xff]
        %v2059 = vld [vmem:[%s1969 + $0x72] sm:$0xff]
        %v2060 = vperm.slane %v1722, 0
        %v2061 = vmul.f32 %v2052, %v2060
        %v2062 = vmul.f32 %v2053, %v2060
        %v2063 = vmul.f32 %v2054, %v2060
        %v2064 = vmul.f32 %v2055, %v2060
        %v2065 = vmul.f32 %v2056, %v2060
        %v2066 = vmul.f32 %v2057, %v2060
        %v2067 = vmul.f32 %v2058, %v2060
        %v2068 = vmul.f32 %v2059, %v2060
        %2069 = vadd.xlane.f32.xlu0 %v2061
        %v2070 = vpop.xlane.xlu0 %2069
        %2071 = vadd.xlane.f32.xlu0 %v2062
        %v2072 = vpop.xlane.xlu0 %2071
        %2073 = vadd.xlane.f32.xlu0 %v2063
        %v2074 = vpop.xlane.xlu0 %2073
        %2075 = vadd.xlane.f32.xlu0 %v2064
        %v2076 = vpop.xlane.xlu0 %2075
        %2077 = vadd.xlane.f32.xlu0 %v2065
        %v2078 = vpop.xlane.xlu0 %2077
        %2079 = vadd.xlane.f32.xlu0 %v2066
        %v2080 = vpop.xlane.xlu0 %2079
        %2081 = vadd.xlane.f32.xlu0 %v2067
        %v2082 = vpop.xlane.xlu0 %2081
        %2083 = vadd.xlane.f32.xlu0 %v2068
        %v2084 = vpop.xlane.xlu0 %2083
        %v2085 = vadd.f32 %v2044, %v2070
        %v2086 = vadd.f32 %v2045, %v2072
        %v2087 = vadd.f32 %v2046, %v2074
        %v2088 = vadd.f32 %v2047, %v2076
        %v2089 = vadd.f32 %v2048, %v2078
        %v2090 = vadd.f32 %v2049, %v2080
        %v2091 = vadd.f32 %v2050, %v2082
        %v2092 = vadd.f32 %v2051, %v2084
        %s2093 = sld [smem:[#allocation4]]
        %v2094 = vstv %s2093
        %v2095 = vadd.f32 %v2085, %v2094
        %v2096 = vadd.f32 %v2086, %v2094
        %v2097 = vadd.f32 %v2087, %v2094
        %v2098 = vadd.f32 %v2088, %v2094
        %v2099 = vadd.f32 %v2089, %v2094
        %v2100 = vadd.f32 %v2090, %v2094
        %v2101 = vadd.f32 %v2091, %v2094
        %v2102 = vadd.f32 %v2092, %v2094
        %v2103 = vld [vmem:[%s8] sm:$0xf]
        %v2104 = vld [vmem:[%s8 + $0x4] sm:$0xf]
        %v2105 = vld [vmem:[%s8 + $0x8] sm:$0xf]
        %v2106 = vld [vmem:[%s8 + $0xc] sm:$0xf]
        %v2107 = vpack.c.bf16 %v2095, %v2095
        %v2108 = vpack.c.bf16 %v2096, %v2096
        %v2109 = vpack.c.bf16 %v2097, %v2097
        %v2110 = vpack.c.bf16 %v2098, %v2098
        %v2111 = vpack.c.bf16 %v2099, %v2099
        %v2112 = vpack.c.bf16 %v2100, %v2100
        %v2113 = vpack.c.bf16 %v2101, %v2101
        %v2114 = vpack.c.bf16 %v2102, %v2102
        %v2119 = vunpack.c.l.b16 %v2103
        %v2120 = vunpack.c.l.b16 %v2104
        %v2121 = vunpack.c.l.b16 %v2105
        %v2122 = vunpack.c.l.b16 %v2106
        %v2123 = vpack.c.b16 %v2120, %v2119
        %v2124 = vpack.c.b16 %v2122, %v2121
        %v2133 = vunpack.c.l.b16 %v2107
        %v2134 = vunpack.c.l.b16 %v2108
        %v2135 = vunpack.c.l.b16 %v2109
        %v2136 = vunpack.c.l.b16 %v2110
        %v2137 = vunpack.c.l.b16 %v2111
        %v2138 = vunpack.c.l.b16 %v2112
        %v2139 = vunpack.c.l.b16 %v2113
        %v2140 = vunpack.c.l.b16 %v2114
        %v2141 = vlaneseq
        %v2142 = vand.u32 %v2141, 127
        %v2143 = vperm.slane %v2133, %v2142
        %v2144 = vperm.slane %v2134, %v2142
        %v2145 = vperm.slane %v2135, %v2142
        %v2146 = vperm.slane %v2136, %v2142
        %v2147 = vperm.slane %v2137, %v2142
        %v2148 = vperm.slane %v2138, %v2142
        %v2149 = vperm.slane %v2139, %v2142
        %v2150 = vperm.slane %v2140, %v2142
        %vm2151 = vcmask 1041409
        %v2152 = vsel %vm2151, %v2144, %v2143
        %vm2153 = vcmask 1042434
        %v2154 = vsel %vm2153, %v2145, %v2152
        %vm2155 = vcmask 1043459
        %v2156 = vsel %vm2155, %v2146, %v2154
        %vm2157 = vcmask 1044484
        %v2158 = vsel %vm2157, %v2147, %v2156
        %vm2159 = vcmask 1045509
        %v2160 = vsel %vm2159, %v2148, %v2158
        %vm2161 = vcmask 1046534
        %v2162 = vsel %vm2161, %v2149, %v2160
        %vm2163 = vcmask 1047559
        %v2164 = vsel %vm2163, %v2150, %v2162
        %v2165 = vpack.c.b16 %v2164, %v2164
        %vm2166 = vcmask 64512
        %v2168 = vsel %vm2166, %v2123, 0
        %v2171 = vsel %vm2166, %v2124, 0
        %vm2173 = vcmask 1043456
        %v2175 = vsel %vm2173, %v2165, 0
        %2177 = vmatpush.bf16.msra.mxu0 0
        %2178 = vmatpush.bf16.msra.mxu0 0
        %2179 = vmatpush.bf16.msra.mxu0 0
        %2180 = vmatpush.bf16.msra.mxu0 0
        %2181 = vmatpush.bf16.msra.mxu0 0
        %2182 = vmatpush.bf16.msra.mxu0 0
        %2183 = vmatpush.bf16.msra.mxu0 0
        %2184 = vmatpush.bf16.msra.mxu0 %v2175
        %2185 = vmatmul.bf16.gmra.mxu0 %v2168
        %v2186 = vpop.f32.mrf.mxu0
        %v2187 = vadd.f32 0.0, %v2186
        %v2188 = vpop.f32.mrf.mxu0
        %v2189 = vadd.f32 0.0, %v2188
        %2190 = vmatmul.bf16.gmra.mxu0 %v2171
        %v2191 = vpop.f32.mrf.mxu0
        %v2192 = vadd.f32 0.0, %v2191
        %v2193 = vpop.f32.mrf.mxu0
        %v2194 = vadd.f32 0.0, %v2193
        %2195 = vdwg.mxu0
        %v2196 = vpack.c.bf16 %v2189, %v2187
        %v2197 = vpack.c.bf16 %v2194, %v2192
        %v2198 = vld [vmem:[%s9] sm:$0xf]
        %v2200 = vsel %vm2166, %v2196, 0
        %v2203 = vsel %vm2166, %v2197, 0
        %v2206 = vsel %vm2173, %v2198, 0
        %2208 = vmatpush.bf16.msra.mxu0 0
        %2209 = vmatpush.bf16.msra.mxu0 0
        %2210 = vmatpush.bf16.msra.mxu0 0
        %2211 = vmatpush.bf16.msra.mxu0 0
        %2212 = vmatpush.bf16.msra.mxu0 0
        %2213 = vmatpush.bf16.msra.mxu0 0
        %2214 = vmatpush.bf16.msra.mxu0 0
        %2215 = vmatpush.bf16.msra.mxu0 %v2206
        %2216 = vmatmul.bf16.gmra.mxu0 %v2200
        %v2217 = vpop.f32.mrf.mxu0
        %v2218 = vadd.f32 0.0, %v2217
        %v2219 = vpop.f32.mrf.mxu0
        %v2220 = vadd.f32 0.0, %v2219
        %2221 = vmatmul.bf16.gmra.mxu0 %v2203
        %v2222 = vpop.f32.mrf.mxu0
        %v2223 = vadd.f32 0.0, %v2222
        %v2224 = vpop.f32.mrf.mxu0
        %v2225 = vadd.f32 0.0, %v2224
        %2226 = vdwg.mxu0
        %vm2227 = vcmask 261120
        %2228 = vst.msk [vmem:[%s391] sm:$0xff] %vm2227, %v2218
        %2229 = vst.msk [vmem:[%s391 + $0x8] sm:$0xff] %vm2227, %v2220
        %2230 = vst.msk [vmem:[%s391 + $0x10] sm:$0xff] %vm2227, %v2223
        %2231 = vst.msk [vmem:[%s391 + $0x18] sm:$0xff] %vm2227, %v2225
        %s2232 = sand.u32 %s253, 1
        %s2233 = scalar_lea.sflag [#allocation6], %s2232
        %s2234 = sand.u32 %s253, 1
        %s2235 = smul.addr %s2234, 32
        %s2236 = scalar_lea.vmem [#allocation5], %s2235
        %s2237 = sand.u32 %s279, 1
        %s2238 = scalar_lea.sflag [#allocation8], %s2237
        %s2239 = sand.u32 %s279, 1
        %s2240 = smul.addr %s2239, 32
        %s2241 = scalar_lea.vmem [#allocation7], %s2240
        // Predicated region
        $region61: #{isnet_edge_forward.1} parent=59 // pred_check
          %p2242 = pneg %p263
        $region62: #{isnet_edge_forward.1} parent=59 // pred_check_branch
          %2244 = sbr.rel (%p2242) target = $region64
        $region63: #{isnet_edge_forward.1} parent=59 // pred_region
          %2246 = vsyncadd %s2233, 0
          %s2247 = smul.addr %s30, 8
          %s2248 = smul.addr %s2247, 4
          %s2249 = scalar_lea.hbm %s10, %s2248
          %s2250 = sshll.u32 %s2236, 4
          %s2251 = int_to_ptr.vmem [resolvable:$true] %s2250
          %s2252 = sshll.u32 %s2249, 4
          %s2253 = int_to_ptr.hbm [resolvable:$true] %s2252
          %2258 = dma.vmem_to_hbm [thread:$0]  %s2251, 512, %s2253, %s2233, 64, 64, 4
        $region64: #{isnet_edge_forward.1} parent=59 // pred_fallthru
          _
        // Predicated region
        $region65: #{isnet_edge_forward.1} parent=59 // pred_check
          %p2259 = pneg %p289
        $region66: #{isnet_edge_forward.1} parent=59 // pred_check_branch
          %2261 = sbr.rel (%p2259) target = $region68
        $region67: #{isnet_edge_forward.1} parent=59 // pred_region
          %2263 = vsyncadd %s2238, 0
          %s2264 = smul.addr %s30, 4
          %s2265 = smul.addr %s2264, 8
          %s2266 = scalar_lea.hbm %s11, %s2265
          %s2267 = sshll.u32 %s2241, 4
          %s2268 = int_to_ptr.vmem [resolvable:$true] %s2267
          %s2269 = sshll.u32 %s2266, 4
          %s2270 = int_to_ptr.hbm [resolvable:$true] %s2269
          %2275 = dma.vmem_to_hbm [thread:$0]  %s2268, 512, %s2270, %s2238, 128, 128, 8
        $region68: #{isnet_edge_forward.1} parent=59 // pred_fallthru
          _
      $region60: #{isnet_edge_forward.1} parent=5 // pred_fallthru
        _
      %p2276 = scmp.le.s32.totalorder 2, %s25
      // Predicated region
      $region69: #{isnet_edge_forward.1} parent=5 // pred_check
        %p2277 = pneg %p2276
      $region70: #{isnet_edge_forward.1} parent=5 // pred_check_branch
        %2279 = sbr.rel (%p2277) target = $region72
      $region71: #{isnet_edge_forward.1} parent=5 // pred_region
        %s2280 = ssub.s32 %s25, 2
        // Predicated region
        $region73: #{isnet_edge_forward.1} parent=71 // pred_check
          %p2281 = pneg %p269
        $region74: #{isnet_edge_forward.1} parent=71 // pred_check_branch
          %2283 = sbr.rel (%p2281) target = $region76
        $region75: #{isnet_edge_forward.1} parent=71 // pred_region
          %s2284 = sand.u32 %s254, 1
          %s2285 = scalar_lea.sflag [#allocation6], %s2284
          %s2286 = sand.u32 %s254, 1
          %s2287 = smul.addr %s2286, 32
          %s2288 = scalar_lea.vmem [#allocation5], %s2287
          %2290 = dma.done %s2285, 512
        $region76: #{isnet_edge_forward.1} parent=71 // pred_fallthru
          _
        // Predicated region
        $region77: #{isnet_edge_forward.1} parent=71 // pred_check
          %p2291 = pneg %p295
        $region78: #{isnet_edge_forward.1} parent=71 // pred_check_branch
          %2293 = sbr.rel (%p2291) target = $region80
        $region79: #{isnet_edge_forward.1} parent=71 // pred_region
          %s2294 = sand.u32 %s280, 1
          %s2295 = scalar_lea.sflag [#allocation8], %s2294
          %s2296 = sand.u32 %s280, 1
          %s2297 = smul.addr %s2296, 32
          %s2298 = scalar_lea.vmem [#allocation7], %s2297
          %2300 = dma.done %s2295, 512
        $region80: #{isnet_edge_forward.1} parent=71 // pred_fallthru
          _
      $region72: #{isnet_edge_forward.1} parent=5 // pred_fallthru
        _
    $region6: #{isnet_edge_forward.1} parent=1 // loop_footer
      %s29 = sadd.s32 1, %s25
    $region7: #{isnet_edge_forward.1} parent=1 // loop_footer_branch
      %24 = sbr.rel target = $region3
    $region8: #{isnet_edge_forward.1} parent=1 // loop_exit
      _
    %2301 = vsyncpa [#allocation6], 1
    %s2302 = scalar_lea.sflag [#allocation6], 1
    %2303 = vsyncpa %s2302, 1
    %2304 = vsyncpa [#allocation8], 1
    %s2305 = scalar_lea.sflag [#allocation8], 1
    %2306 = vsyncpa %s2305, 1

</llo_original>
